<compile_context>
chip_gen: v7x
topology: tpu7x:2x2x1
jax: 0.10.0
libtpu: 0.0.40
codegen_flags: <defaults>
</compile_context>

<pallas_src>
import functools

import jax
import jax.numpy as jnp
import numpy as np
from jax.experimental import pallas as pl
from jax.experimental.pallas import tpu as pltpu


# ----------------------------------------------------------------------------
# Haar transform matrix (single level, orthonormal)
# ----------------------------------------------------------------------------
def haar_matrix(n: int) -> np.ndarray:
    assert n % 2 == 0
    H = np.zeros((n, n), dtype=np.float32)
    c = 1.0 / np.sqrt(2.0)
    half = n // 2
    for k in range(half):
        H[k, 2 * k] = c          # approximation coefficients
        H[k, 2 * k + 1] = c
        H[half + k, 2 * k] = c   # detail coefficients
        H[half + k, 2 * k + 1] = -c
    return H


# ----------------------------------------------------------------------------
# Pallas kernel: full forward pass for one batch tile.
# In-kernel layout: rows = channels (sublanes), cols = b_local*s + x (lanes).
# ----------------------------------------------------------------------------
def simple_block_kernel(x_ref, c_ref, dwt_ref, ww_ref, idwt_ref, w1_ref,
                        o_ref, zsel_ref, *, s, width, hidden):
    xt = x_ref[0]                                         # (2, cols) f32

    # ---- unpack the consolidated, lane-dense constant slab (static slices) [R4]
    r = 0
    w00 = c_ref[r:r + width, :];  r += width              # fc0 weight, in-ch 0
    w01 = c_ref[r:r + width, :];  r += width              # fc0 weight, in-ch 1
    b0 = c_ref[r:r + width, :];   r += width              # fc0 bias
    b1 = c_ref[r:r + hidden, :];  r += hidden             # fc1 bias
    w2 = c_ref[r:r + hidden, :];  r += hidden             # fc2 weight
    masks = c_ref[r:r + s, :];    r += s                  # spatial lane masks [R1]
    b2 = c_ref[r:r + 1, :]                                # fc2 bias

    # fc0 (K=2 matmul is degenerate on the MXU): two VPU MACs + bias (f32).
    h = w00 * xt[0:1, :] + w01 * xt[1:2, :] + b0          # (width, cols)

    # Haar DWT along the spatial axis: one MXU dot against kron(I_bt, H^T),
    # bf16 operands, f32 accumulation.                                     [R3]
    y = jnp.dot(h.astype(jnp.bfloat16), dwt_ref[...],
                preferred_element_type=jnp.float32)       # (width, cols) f32

    # keep == input_len (asserted in wrapper) => spectral truncation = identity.

    # Channel mixing einsum('bix,iox->box') as ONE K=s*width MXU dot.  Stage
    # the block-masked, replicated activation into VMEM scratch block by
    # block so the live register set stays ~ one y tile (no spills).  [R1][R2]
    for m in range(s):                                    # static unroll
        lane_m = masks[m:m + 1, :]                        # (1, cols) 0/1 f32
        zsel_ref[m * width:(m + 1) * width, :] = (y * lane_m).astype(jnp.bfloat16)
    mixed = jnp.dot(ww_ref[...], zsel_ref[...],
                    preferred_element_type=jnp.float32)   # (width, cols) f32

    # Inverse Haar DWT: kron(I_bt, H), one MXU dot.
    w = jnp.dot(mixed.astype(jnp.bfloat16), idwt_ref[...],
                preferred_element_type=jnp.float32)       # (width, cols) f32

    # fc1 + relu: (hidden, width) @ (width, cols) on the MXU, bias/relu on VPU.
    a = jnp.dot(w1_ref[...], w.astype(jnp.bfloat16),
                preferred_element_type=jnp.float32) + b1
    a = jnp.maximum(a, 0.0)                               # (hidden, cols) f32

    # fc2 (N=1 matmul is degenerate): f32 VPU multiply + sublane reduce.
    out = jnp.sum(a * w2, axis=0, keepdims=True) + b2     # (1, cols)

    # Lane-dense store: one contiguous (1, cols) row per tile.
    o_ref[0] = out


# ----------------------------------------------------------------------------
# Wrapper
# ----------------------------------------------------------------------------
def _pick_bt(s, B):
    """Batch-tile size (lanes per grid step), generation aware.          [R5]"""
    kind = ""
    try:
        kind = jax.devices()[0].device_kind.lower()
    except Exception:
        pass
    two_tc = ("v7" in kind) or ("7x" in kind)      # v7x: 2 TensorCores/chip
    lanes = 128 if two_tc else 256                 # v5e/v6e: one 256-lane step
    bt = max(1, lanes // s)
    # Avoid padding the batch by more than necessary while staying >=128 lanes.
    while bt > 1 and bt > B and (bt // 2) * s >= 128:
        bt //= 2
    return bt


def simple_block1d(x, params, keep, *, bt=None):
    (w0t, b0, H, w_wave, w1t, b1, w2t, b2) = params
    B, s, cin = x.shape
    assert cin == 2
    width = w0t.shape[1]
    hidden = w1t.shape[1]
    # The reference einsum 'bix,iox->box' only type-checks when keep == input_len.
    assert keep == s, "SimpleBlock1d forward requires keep == input_len"

    if bt is None:
        bt = _pick_bt(s, B)
    g = pl.cdiv(B, bt)
    bp = g * bt
    if bp != B:
        x = jnp.pad(x, ((0, bp - B), (0, 0), (0, 0)))
    cols = bt * s

    # ---- layout plumbing (wrapper / XLA side, not kernel compute) ----
    # input (Bp, s, 2) -> (g, 2, bt*s) with lane index = b_local*s + x (b-major)
    xt = x.reshape(g, bt, s, 2).transpose(0, 3, 1, 2).reshape(g, 2, cols)
    xt = xt.astype(jnp.float32)

    # MXU-side operands in bf16 (f32 accumulation is kept inside the kernel) [R3]
    eye = jnp.eye(bt, dtype=jnp.float32)
    dwt_r = jnp.kron(eye, H.T).astype(jnp.bfloat16)      # (cols, cols): y = h @ dwt_r
    idwt_r = jnp.kron(eye, H).astype(jnp.bfloat16)       # (cols, cols): w = mixed @ idwt_r
    # wave weights (i, o, m) -> (o, m*width + i)
    ww2 = jnp.transpose(w_wave, (1, 2, 0)).reshape(width, s * width).astype(jnp.bfloat16)
    w1T = w1t.T.astype(jnp.bfloat16)                      # (hidden, width)

    # One consolidated, lane-dense f32 slab of all VPU-side constants.      [R4]
    ones = jnp.ones((1, cols), jnp.float32)
    lane_x = jnp.arange(cols, dtype=jnp.int32) % s        # spatial index per lane
    lane_mask = (lane_x[None, :] ==
                 jnp.arange(s, dtype=jnp.int32)[:, None]).astype(jnp.float32)  # (s, cols)
    consts = jnp.concatenate([
        w0t[0][:, None] * ones,                           # fc0 weight, in-ch 0 (width rows)
        w0t[1][:, None] * ones,                           # fc0 weight, in-ch 1 (width rows)
        b0.reshape(width, 1) * ones,                      # fc0 bias            (width rows)
        b1.reshape(hidden, 1) * ones,                     # fc1 bias            (hidden rows)
        w2t.reshape(hidden, 1) * ones,                    # fc2 weight          (hidden rows)
        lane_mask,                                        # spatial lane masks  (s rows) [R1]
        b2.reshape(1, 1) * ones,                          # fc2 bias            (1 row)
    ], axis=0).astype(jnp.float32)

    kernel = functools.partial(simple_block_kernel, s=s, width=width, hidden=hidden)
    const2 = lambda gi: (0, 0)

    out = pl.pallas_call(
        kernel,
        out_shape=jax.ShapeDtypeStruct((g, 1, cols), jnp.float32),
        grid=(g,),
        in_specs=[
            pl.BlockSpec((1, 2, cols), lambda gi: (gi, 0, 0)),   # packed input tile
            pl.BlockSpec(consts.shape, const2),                  # consolidated consts (f32)
            pl.BlockSpec(dwt_r.shape, const2),                   # kron(I_bt, H^T)     (bf16)
            pl.BlockSpec(ww2.shape, const2),                     # wave weights        (bf16)
            pl.BlockSpec(idwt_r.shape, const2),                  # kron(I_bt, H)       (bf16)
            pl.BlockSpec(w1T.shape, const2),                     # fc1 weight          (bf16)
        ],
        out_specs=pl.BlockSpec((1, 1, cols), lambda gi: (gi, 0, 0)),
        scratch_shapes=[pltpu.VMEM((s * width, cols), jnp.bfloat16)],   # zsel [R2]
        compiler_params=pltpu.CompilerParams(
            dimension_semantics=("parallel",)),                  # >=2 steps only on v7x
    )(xt, consts, dwt_r, ww2, idwt_r, w1T)

    # (g, 1, bt*s) -> (B, s, 1); lane index was b*s + x (b-major), so a plain
    # row-major reshape recovers (batch, x).
    out = out.reshape(g * bt, s)[:B]
    return out[..., None]


# ----------------------------------------------------------------------------
# Pure-JAX reference (mirrors the PyTorch forward exactly, f32 everywhere)
# ----------------------------------------------------------------------------
def reference(x, params, keep):
    (w0t, b0, H, w_wave, w1t, b1, w2t, b2) = params
    h = x @ w0t + b0                                  # fc0: (B, s, width)
    v = jnp.transpose(h, (0, 2, 1))                   # (B, width, s)
    y = jnp.einsum('nm,bcm->bcn', H, v)               # DWT
    z = jnp.zeros_like(y).at[:, :, :keep].set(y[:, :, :keep])
    z = jnp.einsum('bix,iox->box', z, w_wave)         # channel mixing
    w = jnp.einsum('nm,bcm->bcn', H.T, z)             # IDWT
    back = jnp.transpose(w, (0, 2, 1))                # (B, s, width)
    a = jax.nn.relu(back @ w1t + b1)                  # fc1 + relu
    return a @ w2t + b2                               # fc2: (B, s, 1)


# ----------------------------------------------------------------------------
# Main
# ----------------------------------------------------------------------------
if __name__ == "__main__":
    B, s, width, hidden = 16, 16, 32, 128
    keep = s                                          # required by the module's einsum

    key = jax.random.PRNGKey(0)
    ks = jax.random.split(key, 8)

    # deterministic synthetic parameters (shapes match the nn.Module __init__)
    bnd0 = 1.0 / np.sqrt(2.0)
    w0t = jax.random.uniform(ks[0], (2, width), jnp.float32, -bnd0, bnd0)
    b0 = jax.random.uniform(ks[1], (1, width), jnp.float32, -bnd0, bnd0)

    scale = 1.0 / width ** 2
    w_wave = scale * jax.random.uniform(ks[2], (width, width, keep), jnp.float32)

    bnd1 = 1.0 / np.sqrt(width)
    w1t = jax.random.uniform(ks[3], (width, hidden), jnp.float32, -bnd1, bnd1)
    b1 = jax.random.uniform(ks[4], (1, hidden), jnp.float32, -bnd1, bnd1)

    bnd2 = 1.0 / np.sqrt(hidden)
    w2t = jax.random.uniform(ks[5], (hidden, 1), jnp.float32, -bnd2, bnd2)
    b2 = jax.random.uniform(ks[6], (1, 1), jnp.float32, -bnd2, bnd2)

    H = jnp.asarray(haar_matrix(s))
    params = (w0t, b0, H, w_wave, w1t, b1, w2t, b2)

    # example input: (batch, x=s, c=2)  i.e. (a(x), x)
    x = jax.random.normal(ks[7], (B, s, 2), jnp.float32)

    out = jax.block_until_ready(simple_block1d(x, params, keep))

    with jax.default_matmul_precision("float32"):
        ref = jax.block_until_ready(reference(x, params, keep))

    assert out.shape == (B, s, 1)
    assert np.all(np.isfinite(np.asarray(out)))
    # Tolerance loosened vs the all-f32 version because MXU operands are bf16
    # (accumulation stays f32); structural errors would be orders of magnitude
    # larger than this bound.
    np.testing.assert_allclose(np.asarray(out), np.asarray(ref), rtol=2e-2, atol=5e-3)

    print("KERNEL_OK")
</pallas_src>

<mosaic_0001>
module attributes {stable_mosaic.version = 11 : i64} {
  func.func @simple_block_kernel(%arg0: i32, %arg1: memref<1x2x256xf32, #tpu.memory_space<vmem>>, %arg2: memref<369x256xf32, #tpu.memory_space<vmem>>, %arg3: memref<256x256xbf16, #tpu.memory_space<vmem>>, %arg4: memref<32x512xbf16, #tpu.memory_space<vmem>>, %arg5: memref<256x256xbf16, #tpu.memory_space<vmem>>, %arg6: memref<128x32xbf16, #tpu.memory_space<vmem>>, %arg7: memref<1x1x256xf32, #tpu.memory_space<vmem>>, %arg8: memref<512x256xbf16, #tpu.memory_space<vmem>>) attributes {dimension_semantics = [#tpu.dimension_semantics<parallel>], iteration_bounds = array<i64: 1>, scalar_prefetch = 0 : i64, scratch_operands = 1 : i64, tpu.core_type = #tpu.core_type<tc>, window_params = [{transform_indices = @transform_0, window_bounds = array<i64: 1, 2, 256>}, {pipeline_mode = #tpu.pipeline_mode<synchronous>, transform_indices = @transform_1, window_bounds = array<i64: 369, 256>}, {pipeline_mode = #tpu.pipeline_mode<synchronous>, transform_indices = @transform_2, window_bounds = array<i64: 256, 256>}, {pipeline_mode = #tpu.pipeline_mode<synchronous>, transform_indices = @transform_3, window_bounds = array<i64: 32, 512>}, {pipeline_mode = #tpu.pipeline_mode<synchronous>, transform_indices = @transform_4, window_bounds = array<i64: 256, 256>}, {pipeline_mode = #tpu.pipeline_mode<synchronous>, transform_indices = @transform_5, window_bounds = array<i64: 128, 32>}, {transform_indices = @transform_6, window_bounds = array<i64: 1, 1, 256>}]} {
    %c0 = arith.constant 0 : index
    %c0_0 = arith.constant 0 : index
    %c0_1 = arith.constant 0 : index
    %0 = vector.load %arg1[%c0, %c0_0, %c0_1] : memref<1x2x256xf32, #tpu.memory_space<vmem>>, vector<1x2x256xf32>
    %1 = vector.shape_cast %0 : vector<1x2x256xf32> to vector<2x256xf32>
    %c0_2 = arith.constant 0 : index
    %c0_3 = arith.constant 0 : index
    %2 = vector.load %arg2[%c0_2, %c0_3] : memref<369x256xf32, #tpu.memory_space<vmem>>, vector<32x256xf32>
    %c32 = arith.constant 32 : index
    %c0_4 = arith.constant 0 : index
    %3 = vector.load %arg2[%c32, %c0_4] : memref<369x256xf32, #tpu.memory_space<vmem>>, vector<32x256xf32>
    %c64 = arith.constant 64 : index
    %c0_5 = arith.constant 0 : index
    %4 = vector.load %arg2[%c64, %c0_5] : memref<369x256xf32, #tpu.memory_space<vmem>>, vector<32x256xf32>
    %c96 = arith.constant 96 : index
    %c0_6 = arith.constant 0 : index
    %5 = vector.load %arg2[%c96, %c0_6] : memref<369x256xf32, #tpu.memory_space<vmem>>, vector<128x256xf32>
    %c224 = arith.constant 224 : index
    %c0_7 = arith.constant 0 : index
    %6 = vector.load %arg2[%c224, %c0_7] : memref<369x256xf32, #tpu.memory_space<vmem>>, vector<128x256xf32>
    %c352 = arith.constant 352 : index
    %c0_8 = arith.constant 0 : index
    %7 = vector.load %arg2[%c352, %c0_8] : memref<369x256xf32, #tpu.memory_space<vmem>>, vector<16x256xf32>
    %c368 = arith.constant 368 : index
    %c0_9 = arith.constant 0 : index
    %8 = vector.load %arg2[%c368, %c0_9] : memref<369x256xf32, #tpu.memory_space<vmem>>, vector<1x256xf32>
    %9 = vector.extract_strided_slice %1 {offsets = [0, 0], sizes = [1, 256], strides = [1, 1]} : vector<2x256xf32> to vector<1x256xf32>
    %10 = vector.broadcast %9 : vector<1x256xf32> to vector<32x256xf32>
    %11 = arith.mulf %2, %10 : vector<32x256xf32>
    %12 = vector.extract_strided_slice %1 {offsets = [1, 0], sizes = [1, 256], strides = [1, 1]} : vector<2x256xf32> to vector<1x256xf32>
    %13 = vector.broadcast %12 : vector<1x256xf32> to vector<32x256xf32>
    %14 = arith.mulf %3, %13 : vector<32x256xf32>
    %15 = arith.addf %11, %14 : vector<32x256xf32>
    %16 = arith.addf %15, %4 : vector<32x256xf32>
    %17 = arith.truncf %16 : vector<32x256xf32> to vector<32x256xbf16>
    %c0_10 = arith.constant 0 : index
    %c0_11 = arith.constant 0 : index
    %18 = vector.load %arg3[%c0_10, %c0_11] : memref<256x256xbf16, #tpu.memory_space<vmem>>, vector<256x256xbf16>
    %cst = arith.constant dense<0.000000e+00> : vector<32x256xf32>
    %19 = tpu.matmul %17, %18, %cst {dimension_numbers = #tpu.dot_dimension_numbers<[1], [0], [0], [1], [0, 0, 1, 1], [], []>} : vector<32x256xbf16>, vector<256x256xbf16>, vector<32x256xf32> -> vector<32x256xf32>
    %20 = vector.extract_strided_slice %7 {offsets = [0, 0], sizes = [1, 256], strides = [1, 1]} : vector<16x256xf32> to vector<1x256xf32>
    %21 = vector.broadcast %20 : vector<1x256xf32> to vector<32x256xf32>
    %22 = arith.mulf %19, %21 : vector<32x256xf32>
    %23 = arith.truncf %22 : vector<32x256xf32> to vector<32x256xbf16>
    %c0_12 = arith.constant 0 : index
    %c0_13 = arith.constant 0 : index
    %24 = vector.load %arg8[%c0_12, %c0_13] : memref<512x256xbf16, #tpu.memory_space<vmem>>, vector<32x256xbf16>
    tpu.vector_store %arg8[%c0_12, %c0_13], %23 {strides = array<i32>} : memref<512x256xbf16, #tpu.memory_space<vmem>>, vector<32x256xbf16>,
    %25 = vector.extract_strided_slice %7 {offsets = [1, 0], sizes = [1, 256], strides = [1, 1]} : vector<16x256xf32> to vector<1x256xf32>
    %26 = vector.broadcast %25 : vector<1x256xf32> to vector<32x256xf32>
    %27 = arith.mulf %19, %26 : vector<32x256xf32>
    %28 = arith.truncf %27 : vector<32x256xf32> to vector<32x256xbf16>
    %c32_14 = arith.constant 32 : index
    %c0_15 = arith.constant 0 : index
    %29 = vector.load %arg8[%c32_14, %c0_15] : memref<512x256xbf16, #tpu.memory_space<vmem>>, vector<32x256xbf16>
    tpu.vector_store %arg8[%c32_14, %c0_15], %28 {strides = array<i32>} : memref<512x256xbf16, #tpu.memory_space<vmem>>, vector<32x256xbf16>,
    %30 = vector.extract_strided_slice %7 {offsets = [2, 0], sizes = [1, 256], strides = [1, 1]} : vector<16x256xf32> to vector<1x256xf32>
    %31 = vector.broadcast %30 : vector<1x256xf32> to vector<32x256xf32>
    %32 = arith.mulf %19, %31 : vector<32x256xf32>
    %33 = arith.truncf %32 : vector<32x256xf32> to vector<32x256xbf16>
    %c64_16 = arith.constant 64 : index
    %c0_17 = arith.constant 0 : index
    %34 = vector.load %arg8[%c64_16, %c0_17] : memref<512x256xbf16, #tpu.memory_space<vmem>>, vector<32x256xbf16>
    tpu.vector_store %arg8[%c64_16, %c0_17], %33 {strides = array<i32>} : memref<512x256xbf16, #tpu.memory_space<vmem>>, vector<32x256xbf16>,
    %35 = vector.extract_strided_slice %7 {offsets = [3, 0], sizes = [1, 256], strides = [1, 1]} : vector<16x256xf32> to vector<1x256xf32>
    %36 = vector.broadcast %35 : vector<1x256xf32> to vector<32x256xf32>
    %37 = arith.mulf %19, %36 : vector<32x256xf32>
    %38 = arith.truncf %37 : vector<32x256xf32> to vector<32x256xbf16>
    %c96_18 = arith.constant 96 : index
    %c0_19 = arith.constant 0 : index
    %39 = vector.load %arg8[%c96_18, %c0_19] : memref<512x256xbf16, #tpu.memory_space<vmem>>, vector<32x256xbf16>
    tpu.vector_store %arg8[%c96_18, %c0_19], %38 {strides = array<i32>} : memref<512x256xbf16, #tpu.memory_space<vmem>>, vector<32x256xbf16>,
    %40 = vector.extract_strided_slice %7 {offsets = [4, 0], sizes = [1, 256], strides = [1, 1]} : vector<16x256xf32> to vector<1x256xf32>
    %41 = vector.broadcast %40 : vector<1x256xf32> to vector<32x256xf32>
    %42 = arith.mulf %19, %41 : vector<32x256xf32>
    %43 = arith.truncf %42 : vector<32x256xf32> to vector<32x256xbf16>
    %c128 = arith.constant 128 : index
    %c0_20 = arith.constant 0 : index
    %44 = vector.load %arg8[%c128, %c0_20] : memref<512x256xbf16, #tpu.memory_space<vmem>>, vector<32x256xbf16>
    tpu.vector_store %arg8[%c128, %c0_20], %43 {strides = array<i32>} : memref<512x256xbf16, #tpu.memory_space<vmem>>, vector<32x256xbf16>,
    %45 = vector.extract_strided_slice %7 {offsets = [5, 0], sizes = [1, 256], strides = [1, 1]} : vector<16x256xf32> to vector<1x256xf32>
    %46 = vector.broadcast %45 : vector<1x256xf32> to vector<32x256xf32>
    %47 = arith.mulf %19, %46 : vector<32x256xf32>
    %48 = arith.truncf %47 : vector<32x256xf32> to vector<32x256xbf16>
    %c160 = arith.constant 160 : index
    %c0_21 = arith.constant 0 : index
    %49 = vector.load %arg8[%c160, %c0_21] : memref<512x256xbf16, #tpu.memory_space<vmem>>, vector<32x256xbf16>
    tpu.vector_store %arg8[%c160, %c0_21], %48 {strides = array<i32>} : memref<512x256xbf16, #tpu.memory_space<vmem>>, vector<32x256xbf16>,
    %50 = vector.extract_strided_slice %7 {offsets = [6, 0], sizes = [1, 256], strides = [1, 1]} : vector<16x256xf32> to vector<1x256xf32>
    %51 = vector.broadcast %50 : vector<1x256xf32> to vector<32x256xf32>
    %52 = arith.mulf %19, %51 : vector<32x256xf32>
    %53 = arith.truncf %52 : vector<32x256xf32> to vector<32x256xbf16>
    %c192 = arith.constant 192 : index
    %c0_22 = arith.constant 0 : index
    %54 = vector.load %arg8[%c192, %c0_22] : memref<512x256xbf16, #tpu.memory_space<vmem>>, vector<32x256xbf16>
    tpu.vector_store %arg8[%c192, %c0_22], %53 {strides = array<i32>} : memref<512x256xbf16, #tpu.memory_space<vmem>>, vector<32x256xbf16>,
    %55 = vector.extract_strided_slice %7 {offsets = [7, 0], sizes = [1, 256], strides = [1, 1]} : vector<16x256xf32> to vector<1x256xf32>
    %56 = vector.broadcast %55 : vector<1x256xf32> to vector<32x256xf32>
    %57 = arith.mulf %19, %56 : vector<32x256xf32>
    %58 = arith.truncf %57 : vector<32x256xf32> to vector<32x256xbf16>
    %c224_23 = arith.constant 224 : index
    %c0_24 = arith.constant 0 : index
    %59 = vector.load %arg8[%c224_23, %c0_24] : memref<512x256xbf16, #tpu.memory_space<vmem>>, vector<32x256xbf16>
    tpu.vector_store %arg8[%c224_23, %c0_24], %58 {strides = array<i32>} : memref<512x256xbf16, #tpu.memory_space<vmem>>, vector<32x256xbf16>,
    %60 = vector.extract_strided_slice %7 {offsets = [8, 0], sizes = [1, 256], strides = [1, 1]} : vector<16x256xf32> to vector<1x256xf32>
    %61 = vector.broadcast %60 : vector<1x256xf32> to vector<32x256xf32>
    %62 = arith.mulf %19, %61 : vector<32x256xf32>
    %63 = arith.truncf %62 : vector<32x256xf32> to vector<32x256xbf16>
    %c256 = arith.constant 256 : index
    %c0_25 = arith.constant 0 : index
    %64 = vector.load %arg8[%c256, %c0_25] : memref<512x256xbf16, #tpu.memory_space<vmem>>, vector<32x256xbf16>
    tpu.vector_store %arg8[%c256, %c0_25], %63 {strides = array<i32>} : memref<512x256xbf16, #tpu.memory_space<vmem>>, vector<32x256xbf16>,
    %65 = vector.extract_strided_slice %7 {offsets = [9, 0], sizes = [1, 256], strides = [1, 1]} : vector<16x256xf32> to vector<1x256xf32>
    %66 = vector.broadcast %65 : vector<1x256xf32> to vector<32x256xf32>
    %67 = arith.mulf %19, %66 : vector<32x256xf32>
    %68 = arith.truncf %67 : vector<32x256xf32> to vector<32x256xbf16>
    %c288 = arith.constant 288 : index
    %c0_26 = arith.constant 0 : index
    %69 = vector.load %arg8[%c288, %c0_26] : memref<512x256xbf16, #tpu.memory_space<vmem>>, vector<32x256xbf16>
    tpu.vector_store %arg8[%c288, %c0_26], %68 {strides = array<i32>} : memref<512x256xbf16, #tpu.memory_space<vmem>>, vector<32x256xbf16>,
    %70 = vector.extract_strided_slice %7 {offsets = [10, 0], sizes = [1, 256], strides = [1, 1]} : vector<16x256xf32> to vector<1x256xf32>
    %71 = vector.broadcast %70 : vector<1x256xf32> to vector<32x256xf32>
    %72 = arith.mulf %19, %71 : vector<32x256xf32>
    %73 = arith.truncf %72 : vector<32x256xf32> to vector<32x256xbf16>
    %c320 = arith.constant 320 : index
    %c0_27 = arith.constant 0 : index
    %74 = vector.load %arg8[%c320, %c0_27] : memref<512x256xbf16, #tpu.memory_space<vmem>>, vector<32x256xbf16>
    tpu.vector_store %arg8[%c320, %c0_27], %73 {strides = array<i32>} : memref<512x256xbf16, #tpu.memory_space<vmem>>, vector<32x256xbf16>,
    %75 = vector.extract_strided_slice %7 {offsets = [11, 0], sizes = [1, 256], strides = [1, 1]} : vector<16x256xf32> to vector<1x256xf32>
    %76 = vector.broadcast %75 : vector<1x256xf32> to vector<32x256xf32>
    %77 = arith.mulf %19, %76 : vector<32x256xf32>
    %78 = arith.truncf %77 : vector<32x256xf32> to vector<32x256xbf16>
    %c352_28 = arith.constant 352 : index
    %c0_29 = arith.constant 0 : index
    %79 = vector.load %arg8[%c352_28, %c0_29] : memref<512x256xbf16, #tpu.memory_space<vmem>>, vector<32x256xbf16>
    tpu.vector_store %arg8[%c352_28, %c0_29], %78 {strides = array<i32>} : memref<512x256xbf16, #tpu.memory_space<vmem>>, vector<32x256xbf16>,
    %80 = vector.extract_strided_slice %7 {offsets = [12, 0], sizes = [1, 256], strides = [1, 1]} : vector<16x256xf32> to vector<1x256xf32>
    %81 = vector.broadcast %80 : vector<1x256xf32> to vector<32x256xf32>
    %82 = arith.mulf %19, %81 : vector<32x256xf32>
    %83 = arith.truncf %82 : vector<32x256xf32> to vector<32x256xbf16>
    %c384 = arith.constant 384 : index
    %c0_30 = arith.constant 0 : index
    %84 = vector.load %arg8[%c384, %c0_30] : memref<512x256xbf16, #tpu.memory_space<vmem>>, vector<32x256xbf16>
    tpu.vector_store %arg8[%c384, %c0_30], %83 {strides = array<i32>} : memref<512x256xbf16, #tpu.memory_space<vmem>>, vector<32x256xbf16>,
    %85 = vector.extract_strided_slice %7 {offsets = [13, 0], sizes = [1, 256], strides = [1, 1]} : vector<16x256xf32> to vector<1x256xf32>
    %86 = vector.broadcast %85 : vector<1x256xf32> to vector<32x256xf32>
    %87 = arith.mulf %19, %86 : vector<32x256xf32>
    %88 = arith.truncf %87 : vector<32x256xf32> to vector<32x256xbf16>
    %c416 = arith.constant 416 : index
    %c0_31 = arith.constant 0 : index
    %89 = vector.load %arg8[%c416, %c0_31] : memref<512x256xbf16, #tpu.memory_space<vmem>>, vector<32x256xbf16>
    tpu.vector_store %arg8[%c416, %c0_31], %88 {strides = array<i32>} : memref<512x256xbf16, #tpu.memory_space<vmem>>, vector<32x256xbf16>,
    %90 = vector.extract_strided_slice %7 {offsets = [14, 0], sizes = [1, 256], strides = [1, 1]} : vector<16x256xf32> to vector<1x256xf32>
    %91 = vector.broadcast %90 : vector<1x256xf32> to vector<32x256xf32>
    %92 = arith.mulf %19, %91 : vector<32x256xf32>
    %93 = arith.truncf %92 : vector<32x256xf32> to vector<32x256xbf16>
    %c448 = arith.constant 448 : index
    %c0_32 = arith.constant 0 : index
    %94 = vector.load %arg8[%c448, %c0_32] : memref<512x256xbf16, #tpu.memory_space<vmem>>, vector<32x256xbf16>
    tpu.vector_store %arg8[%c448, %c0_32], %93 {strides = array<i32>} : memref<512x256xbf16, #tpu.memory_space<vmem>>, vector<32x256xbf16>,
    %95 = vector.extract_strided_slice %7 {offsets = [15, 0], sizes = [1, 256], strides = [1, 1]} : vector<16x256xf32> to vector<1x256xf32>
    %96 = vector.broadcast %95 : vector<1x256xf32> to vector<32x256xf32>
    %97 = arith.mulf %19, %96 : vector<32x256xf32>
    %98 = arith.truncf %97 : vector<32x256xf32> to vector<32x256xbf16>
    %c480 = arith.constant 480 : index
    %c0_33 = arith.constant 0 : index
    %99 = vector.load %arg8[%c480, %c0_33] : memref<512x256xbf16, #tpu.memory_space<vmem>>, vector<32x256xbf16>
    tpu.vector_store %arg8[%c480, %c0_33], %98 {strides = array<i32>} : memref<512x256xbf16, #tpu.memory_space<vmem>>, vector<32x256xbf16>,
    %c0_34 = arith.constant 0 : index
    %c0_35 = arith.constant 0 : index
    %100 = vector.load %arg4[%c0_34, %c0_35] : memref<32x512xbf16, #tpu.memory_space<vmem>>, vector<32x512xbf16>
    %c0_36 = arith.constant 0 : index
    %c0_37 = arith.constant 0 : index
    %101 = vector.load %arg8[%c0_36, %c0_37] : memref<512x256xbf16, #tpu.memory_space<vmem>>, vector<512x256xbf16>
    %cst_38 = arith.constant dense<0.000000e+00> : vector<32x256xf32>
    %102 = tpu.matmul %100, %101, %cst_38 {dimension_numbers = #tpu.dot_dimension_numbers<[1], [0], [0], [1], [0, 0, 1, 1], [], []>} : vector<32x512xbf16>, vector<512x256xbf16>, vector<32x256xf32> -> vector<32x256xf32>
    %103 = arith.truncf %102 : vector<32x256xf32> to vector<32x256xbf16>
    %c0_39 = arith.constant 0 : index
    %c0_40 = arith.constant 0 : index
    %104 = vector.load %arg5[%c0_39, %c0_40] : memref<256x256xbf16, #tpu.memory_space<vmem>>, vector<256x256xbf16>
    %cst_41 = arith.constant dense<0.000000e+00> : vector<32x256xf32>
    %105 = tpu.matmul %103, %104, %cst_41 {dimension_numbers = #tpu.dot_dimension_numbers<[1], [0], [0], [1], [0, 0, 1, 1], [], []>} : vector<32x256xbf16>, vector<256x256xbf16>, vector<32x256xf32> -> vector<32x256xf32>
    %c0_42 = arith.constant 0 : index
    %c0_43 = arith.constant 0 : index
    %106 = vector.load %arg6[%c0_42, %c0_43] : memref<128x32xbf16, #tpu.memory_space<vmem>>, vector<128x32xbf16>
    %107 = arith.truncf %105 : vector<32x256xf32> to vector<32x256xbf16>
    %cst_44 = arith.constant dense<0.000000e+00> : vector<128x256xf32>
    %108 = tpu.matmul %106, %107, %cst_44 {dimension_numbers = #tpu.dot_dimension_numbers<[1], [0], [0], [1], [0, 0, 1, 1], [], []>} : vector<128x32xbf16>, vector<32x256xbf16>, vector<128x256xf32> -> vector<128x256xf32>
    %109 = arith.addf %108, %5 : vector<128x256xf32>
    %cst_45 = arith.constant 0.000000e+00 : f32
    %110 = vector.broadcast %cst_45 : f32 to vector<128x256xf32>
    %111 = arith.maximumf %109, %110 : vector<128x256xf32>
    %112 = arith.mulf %111, %6 : vector<128x256xf32>
    %cst_46 = arith.constant dense<0.000000e+00> : vector<256xf32>
    %113 = vector.multi_reduction <add>, %112, %cst_46 [0] : vector<128x256xf32> to vector<256xf32>
    %114 = vector.shape_cast %113 : vector<256xf32> to vector<1x256xf32>
    %115 = arith.addf %114, %8 : vector<1x256xf32>
    %c0_47 = arith.constant 0 : index
    %c0_48 = arith.constant 0 : index
    %c0_49 = arith.constant 0 : index
    %116 = vector.load %arg7[%c0_47, %c0_48, %c0_49] : memref<1x1x256xf32, #tpu.memory_space<vmem>>, vector<1x1x256xf32>
    %117 = vector.shape_cast %116 : vector<1x1x256xf32> to vector<1x256xf32>
    %118 = vector.shape_cast %115 : vector<1x256xf32> to vector<1x1x256xf32>
    tpu.vector_store %arg7[%c0_47, %c0_48, %c0_49], %118 {strides = array<i32>} : memref<1x1x256xf32, #tpu.memory_space<vmem>>, vector<1x1x256xf32>,
    return
  }
  func.func @transform_0(%arg0: i32) -> (i32, i32, i32) {
    %c0_i32 = arith.constant 0 : i32
    %c0_i32_0 = arith.constant 0 : i32
    %c0_i32_1 = arith.constant 0 : i32
    return %arg0, %c0_i32, %c0_i32_0 : i32, i32, i32
  }
  func.func @transform_1(%arg0: i32) -> (i32, i32) {
    %c0_i32 = arith.constant 0 : i32
    %c0_i32_0 = arith.constant 0 : i32
    %c0_i32_1 = arith.constant 0 : i32
    return %c0_i32, %c0_i32_0 : i32, i32
  }
  func.func @transform_2(%arg0: i32) -> (i32, i32) {
    %c0_i32 = arith.constant 0 : i32
    %c0_i32_0 = arith.constant 0 : i32
    %c0_i32_1 = arith.constant 0 : i32
    return %c0_i32, %c0_i32_0 : i32, i32
  }
  func.func @transform_3(%arg0: i32) -> (i32, i32) {
    %c0_i32 = arith.constant 0 : i32
    %c0_i32_0 = arith.constant 0 : i32
    %c0_i32_1 = arith.constant 0 : i32
    return %c0_i32, %c0_i32_0 : i32, i32
  }
  func.func @transform_4(%arg0: i32) -> (i32, i32) {
    %c0_i32 = arith.constant 0 : i32
    %c0_i32_0 = arith.constant 0 : i32
    %c0_i32_1 = arith.constant 0 : i32
    return %c0_i32, %c0_i32_0 : i32, i32
  }
  func.func @transform_5(%arg0: i32) -> (i32, i32) {
    %c0_i32 = arith.constant 0 : i32
    %c0_i32_0 = arith.constant 0 : i32
    %c0_i32_1 = arith.constant 0 : i32
    return %c0_i32, %c0_i32_0 : i32, i32
  }
  func.func @transform_6(%arg0: i32) -> (i32, i32, i32) {
    %c0_i32 = arith.constant 0 : i32
    %c0_i32_0 = arith.constant 0 : i32
    %c0_i32_1 = arith.constant 0 : i32
    return %arg0, %c0_i32, %c0_i32_0 : i32, i32, i32
  }
}

</mosaic_0001>

<llo_original>
// kernel: tpu_custom_call.1
$region0: #{tpu_custom_call.1}
  #allocation0 [shape = 'u32[]', space=smem, size = 0x4, offset = 0x4, fixed_abs, tag = 'smem constant byte address 0x4 - core index']
  #allocation1 [shape = 'u32[144,128]{1,0:T(1,128)}', space=vmem, size = 0x12000, scoped, tag = 'internal scratch']
  #allocation2 [shape = 'bf16[512,256]{1,0:T(16,128)(2,1)}', space=vmem, size = 0x40000, scoped, tag = 'scratch operand']
  %s0 = inlined_call_operand.vmem [shape: f32[1,2,256], index: 0, kind: input, shape index: {}]
  %s1 = inlined_call_operand.hbm [shape: f32[369,256], index: 1, kind: input, shape index: {}]
  %s2 = inlined_call_operand.hbm [shape: bf16[256,256], index: 2, kind: input, shape index: {}]
  %s3 = inlined_call_operand.vmem [shape: bf16[32,512], index: 3, kind: input, shape index: {}]
  %s4 = inlined_call_operand.hbm [shape: bf16[256,256], index: 4, kind: input, shape index: {}]
  %s5 = inlined_call_operand.vmem [shape: bf16[128,32], index: 5, kind: input, shape index: {}]
  %s6 = inlined_call_operand.hbm [shape: f32[1,1,256], index: 6, kind: output, shape index: {}]
  %s7 = sld [smem:[#allocation0]]
  $region46: #{tpu_custom_call.1} parent=0
    _
  %s9 = ssub.s32 1, %s7
  %s10 = scalar_select 0, %s9, %s7
  $region1: #{tpu_custom_call.1} parent=0
    #allocation3 [shape = 'u8[385024]{0}', space=vmem, size = 0x5e000, scoped, tag = 'input window, operand 1, single buffered']
    #allocation4 [shape = 's32[1]{0}', space=sflag, size = 0x4, scoped, tag = 'scoped memory for tpu_custom_call.1']
    #allocation5 [shape = 's32[1]{0}', space=sflag, size = 0x4, scoped, tag = 'scoped memory for tpu_custom_call.1']
    #allocation6 [shape = 'u8[131072]{0}', space=vmem, size = 0x20000, scoped, tag = 'input window, operand 2, single buffered']
    #allocation7 [shape = 's32[1]{0}', space=sflag, size = 0x4, scoped, tag = 'scoped memory for tpu_custom_call.1']
    #allocation8 [shape = 'u8[131072]{0}', space=vmem, size = 0x20000, scoped, tag = 'input window, operand 4, single buffered']
    #allocation9 [shape = 'u8[1024]{0}', space=vmem, size = 0x400, scoped, tag = 'output window, operand 0, single buffered']
    %11 = vsyncpa [#allocation4], 0
    %12 = vsyncpa [#allocation7], 0
    %13 = vsyncpa [#allocation5], 0
    // Predicated region
    $region2: #{tpu_custom_call.1} parent=1 // pred_check
      _
    $region3: #{tpu_custom_call.1} parent=1 // pred_check_branch
      %15 = sbr.rel (0) target = $region5
    $region4: #{tpu_custom_call.1} parent=1 // pred_region
      _
    $region5: #{tpu_custom_call.1} parent=1 // pred_fallthru
      _
    // Predicated region
    $region6: #{tpu_custom_call.1} parent=1 // pred_check
      _
    $region7: #{tpu_custom_call.1} parent=1 // pred_check_branch
      %17 = sbr.rel (0) target = $region9
    $region8: #{tpu_custom_call.1} parent=1 // pred_region
      %s19 = ssub.s32 12032, 12032
      %20 = vsyncadd [#allocation4], %s19
      %s21 = sshll.u32 [#allocation3], 4
      %s22 = int_to_ptr.vmem [resolvable:$true] %s21
      %27 = dma.hbm_to_vmem [thread:$0]  %s1, 12032, %s22, [#allocation4], 256, 256, 16
    $region9: #{tpu_custom_call.1} parent=1 // pred_fallthru
      _
    // Predicated region
    $region10: #{tpu_custom_call.1} parent=1 // pred_check
      _
    $region11: #{tpu_custom_call.1} parent=1 // pred_check_branch
      %29 = sbr.rel (0) target = $region13
    $region12: #{tpu_custom_call.1} parent=1 // pred_region
      %s31 = ssub.s32 4096, 4096
      %32 = vsyncadd [#allocation7], %s31
      %s33 = sshll.u32 [#allocation6], 4
      %s34 = int_to_ptr.vmem [resolvable:$true] %s33
      %39 = dma.hbm_to_vmem [thread:$0]  %s2, 4096, %s34, [#allocation7], 128, 128, 8
    $region13: #{tpu_custom_call.1} parent=1 // pred_fallthru
      _
    // Predicated region
    $region14: #{tpu_custom_call.1} parent=1 // pred_check
      _
    $region15: #{tpu_custom_call.1} parent=1 // pred_check_branch
      %41 = sbr.rel (0) target = $region17
    $region16: #{tpu_custom_call.1} parent=1 // pred_region
      _
    $region17: #{tpu_custom_call.1} parent=1 // pred_fallthru
      _
    // Predicated region
    $region18: #{tpu_custom_call.1} parent=1 // pred_check
      _
    $region19: #{tpu_custom_call.1} parent=1 // pred_check_branch
      %43 = sbr.rel (0) target = $region21
    $region20: #{tpu_custom_call.1} parent=1 // pred_region
      %s45 = ssub.s32 4096, 4096
      %46 = vsyncadd [#allocation7], %s45
      %s47 = sshll.u32 [#allocation8], 4
      %s48 = int_to_ptr.vmem [resolvable:$true] %s47
      %53 = dma.hbm_to_vmem [thread:$0]  %s4, 4096, %s48, [#allocation7], 128, 128, 8
    $region21: #{tpu_custom_call.1} parent=1 // pred_fallthru
      _
    // Predicated region
    $region22: #{tpu_custom_call.1} parent=1 // pred_check
      _
    $region23: #{tpu_custom_call.1} parent=1 // pred_check_branch
      %55 = sbr.rel (0) target = $region25
    $region24: #{tpu_custom_call.1} parent=1 // pred_region
      _
    $region25: #{tpu_custom_call.1} parent=1 // pred_fallthru
      _
    // Predicated region
    $region26: #{tpu_custom_call.1} parent=1 // pred_check
      _
    $region27: #{tpu_custom_call.1} parent=1 // pred_check_branch
      %57 = sbr.rel (0) target = $region29
    $region28: #{tpu_custom_call.1} parent=1 // pred_region
      %58 = dma.done [#allocation4], 12032
    $region29: #{tpu_custom_call.1} parent=1 // pred_fallthru
      _
    // Predicated region
    $region30: #{tpu_custom_call.1} parent=1 // pred_check
      _
    $region31: #{tpu_custom_call.1} parent=1 // pred_check_branch
      %60 = sbr.rel (0) target = $region33
    $region32: #{tpu_custom_call.1} parent=1 // pred_region
      %61 = dma.done [#allocation7], 4096
    $region33: #{tpu_custom_call.1} parent=1 // pred_fallthru
      _
    // Predicated region
    $region34: #{tpu_custom_call.1} parent=1 // pred_check
      _
    $region35: #{tpu_custom_call.1} parent=1 // pred_check_branch
      %63 = sbr.rel (0) target = $region37
    $region36: #{tpu_custom_call.1} parent=1 // pred_region
      %64 = dma.done [#allocation7], 4096
    $region37: #{tpu_custom_call.1} parent=1 // pred_fallthru
      _
    %v66 = vld [vmem:[%s0] sm:$0xf]
    %v67 = vld [vmem:[#allocation3] sm:$0xff]
    %v68 = vld [vmem:[#allocation3 + $0x8] sm:$0xff]
    %v69 = vld [vmem:[#allocation3 + $0x10] sm:$0xff]
    %v70 = vld [vmem:[#allocation3 + $0x18] sm:$0xff]
    %v71 = vld [vmem:[#allocation3 + $0x20] sm:$0xff]
    %v72 = vld [vmem:[#allocation3 + $0x28] sm:$0xff]
    %v73 = vld [vmem:[#allocation3 + $0x30] sm:$0xff]
    %v74 = vld [vmem:[#allocation3 + $0x38] sm:$0xff]
    %v75 = vld [vmem:[#allocation3 + $0x40] sm:$0xff]
    %v76 = vld [vmem:[#allocation3 + $0x48] sm:$0xff]
    %v77 = vld [vmem:[#allocation3 + $0x50] sm:$0xff]
    %v78 = vld [vmem:[#allocation3 + $0x58] sm:$0xff]
    %v79 = vld [vmem:[#allocation3 + $0x60] sm:$0xff]
    %v80 = vld [vmem:[#allocation3 + $0x68] sm:$0xff]
    %v81 = vld [vmem:[#allocation3 + $0x70] sm:$0xff]
    %v82 = vld [vmem:[#allocation3 + $0x78] sm:$0xff]
    %v83 = vld [vmem:[#allocation3 + $0x80] sm:$0xff]
    %v84 = vld [vmem:[#allocation3 + $0x88] sm:$0xff]
    %v85 = vld [vmem:[#allocation3 + $0x90] sm:$0xff]
    %v86 = vld [vmem:[#allocation3 + $0x98] sm:$0xff]
    %v87 = vld [vmem:[#allocation3 + $0xa0] sm:$0xff]
    %v88 = vld [vmem:[#allocation3 + $0xa8] sm:$0xff]
    %v89 = vld [vmem:[#allocation3 + $0xb0] sm:$0xff]
    %v90 = vld [vmem:[#allocation3 + $0xb8] sm:$0xff]
    %v91 = vld [vmem:[#allocation3 + $0xc0] sm:$0xff]
    %v92 = vld [vmem:[#allocation3 + $0xc8] sm:$0xff]
    %v93 = vld [vmem:[#allocation3 + $0xd0] sm:$0xff]
    %v94 = vld [vmem:[#allocation3 + $0xd8] sm:$0xff]
    %v95 = vld [vmem:[#allocation3 + $0xe0] sm:$0xff]
    %v96 = vld [vmem:[#allocation3 + $0xe8] sm:$0xff]
    %v97 = vld [vmem:[#allocation3 + $0xf0] sm:$0xff]
    %v98 = vld [vmem:[#allocation3 + $0xf8] sm:$0xff]
    %v99 = vld [vmem:[#allocation3 + $0x100] sm:$0xff]
    %v100 = vld [vmem:[#allocation3 + $0x108] sm:$0xff]
    %v101 = vld [vmem:[#allocation3 + $0x110] sm:$0xff]
    %v102 = vld [vmem:[#allocation3 + $0x118] sm:$0xff]
    %v103 = vld [vmem:[#allocation3 + $0x120] sm:$0xff]
    %v104 = vld [vmem:[#allocation3 + $0x128] sm:$0xff]
    %v105 = vld [vmem:[#allocation3 + $0x130] sm:$0xff]
    %v106 = vld [vmem:[#allocation3 + $0x138] sm:$0xff]
    %v107 = vld [vmem:[#allocation3 + $0x140] sm:$0xff]
    %v108 = vld [vmem:[#allocation3 + $0x148] sm:$0xff]
    %v109 = vld [vmem:[#allocation3 + $0x150] sm:$0xff]
    %v110 = vld [vmem:[#allocation3 + $0x158] sm:$0xff]
    %v111 = vld [vmem:[#allocation3 + $0x160] sm:$0xff]
    %v112 = vld [vmem:[#allocation3 + $0x168] sm:$0xff]
    %v113 = vld [vmem:[#allocation3 + $0x170] sm:$0xff]
    %v114 = vld [vmem:[#allocation3 + $0x178] sm:$0xff]
    %v115 = vld [vmem:[#allocation3 + $0x180] sm:$0xff]
    %v116 = vld [vmem:[#allocation3 + $0x188] sm:$0xff]
    %v117 = vld [vmem:[#allocation3 + $0x190] sm:$0xff]
    %v118 = vld [vmem:[#allocation3 + $0x198] sm:$0xff]
    %v119 = vld [vmem:[#allocation3 + $0x1a0] sm:$0xff]
    %v120 = vld [vmem:[#allocation3 + $0x1a8] sm:$0xff]
    %v121 = vld [vmem:[#allocation3 + $0x1b0] sm:$0xff]
    %v122 = vld [vmem:[#allocation3 + $0x1b8] sm:$0xff]
    %v123 = vld [vmem:[#allocation3 + $0x1c0] sm:$0xff]
    %v124 = vld [vmem:[#allocation3 + $0x1c8] sm:$0xff]
    %v125 = vld [vmem:[#allocation3 + $0x1d0] sm:$0xff]
    %v126 = vld [vmem:[#allocation3 + $0x1d8] sm:$0xff]
    %v127 = vld [vmem:[#allocation3 + $0x1e0] sm:$0xff]
    %v128 = vld [vmem:[#allocation3 + $0x1e8] sm:$0xff]
    %v129 = vld [vmem:[#allocation3 + $0x1f0] sm:$0xff]
    %v130 = vld [vmem:[#allocation3 + $0x1f8] sm:$0xff]
    %v131 = vld [vmem:[#allocation3 + $0x200] sm:$0xff]
    %v132 = vld [vmem:[#allocation3 + $0x208] sm:$0xff]
    %v133 = vld [vmem:[#allocation3 + $0x210] sm:$0xff]
    %v134 = vld [vmem:[#allocation3 + $0x218] sm:$0xff]
    %v135 = vld [vmem:[#allocation3 + $0x220] sm:$0xff]
    %v136 = vld [vmem:[#allocation3 + $0x228] sm:$0xff]
    %v137 = vld [vmem:[#allocation3 + $0x230] sm:$0xff]
    %v138 = vld [vmem:[#allocation3 + $0x238] sm:$0xff]
    %v139 = vld [vmem:[#allocation3 + $0x240] sm:$0xff]
    %v140 = vld [vmem:[#allocation3 + $0x248] sm:$0xff]
    %v141 = vld [vmem:[#allocation3 + $0x250] sm:$0xff]
    %v142 = vld [vmem:[#allocation3 + $0x258] sm:$0xff]
    %v143 = vld [vmem:[#allocation3 + $0x260] sm:$0xff]
    %v144 = vld [vmem:[#allocation3 + $0x268] sm:$0xff]
    %v145 = vld [vmem:[#allocation3 + $0x270] sm:$0xff]
    %v146 = vld [vmem:[#allocation3 + $0x278] sm:$0xff]
    %v147 = vld [vmem:[#allocation3 + $0x280] sm:$0xff]
    %v148 = vld [vmem:[#allocation3 + $0x288] sm:$0xff]
    %v149 = vld [vmem:[#allocation3 + $0x290] sm:$0xff]
    %v150 = vld [vmem:[#allocation3 + $0x298] sm:$0xff]
    %v151 = vld [vmem:[#allocation3 + $0x2a0] sm:$0xff]
    %v152 = vld [vmem:[#allocation3 + $0x2a8] sm:$0xff]
    %v153 = vld [vmem:[#allocation3 + $0x2b0] sm:$0xff]
    %v154 = vld [vmem:[#allocation3 + $0x2b8] sm:$0xff]
    %v155 = vld [vmem:[#allocation3 + $0x2c0] sm:$0xff]
    %v156 = vld [vmem:[#allocation3 + $0x2c8] sm:$0xff]
    %v157 = vld [vmem:[#allocation3 + $0x2d0] sm:$0xff]
    %v158 = vld [vmem:[#allocation3 + $0x2d8] sm:$0xff]
    %s159 = scalar_lea.vmem [#allocation3], 736
    %v160 = vld [vmem:[%s159] ss:$8 sm:$0x3]
    %v162 = vlaneseq
    %v163 = vshrl.u32 %v162, 7
    %v164 = vsub.s32 0, %v163
    %v165 = vrot.slane %v66, %v164
    %v166 = vlaneseq
    %v167 = vshrl.u32 %v166, 7
    %v168 = vsub.s32 2, %v167
    %v169 = vrot.slane %v66, %v168
    %v172 = vlaneseq
    %v173 = vshrl.u32 %v172, 7
    %v174 = vsub.s32 0, %v173
    %v175 = vrot.slane %v165, %v174
    %v176 = vlaneseq
    %v177 = vshrl.u32 %v176, 7
    %v178 = vsub.s32 0, %v177
    %v179 = vrot.slane %v169, %v178
    %v180 = vmul.f32 %v67, %v175
    %v181 = vmul.f32 %v68, %v179
    %v182 = vmul.f32 %v69, %v175
    %v183 = vmul.f32 %v70, %v179
    %v184 = vmul.f32 %v71, %v175
    %v185 = vmul.f32 %v72, %v179
    %v186 = vmul.f32 %v73, %v175
    %v187 = vmul.f32 %v74, %v179
    %v188 = vlaneseq
    %v189 = vshrl.u32 %v188, 7
    %v190 = vsub.s32 1, %v189
    %v191 = vrot.slane %v66, %v190
    %v192 = vlaneseq
    %v193 = vshrl.u32 %v192, 7
    %v194 = vsub.s32 3, %v193
    %v195 = vrot.slane %v66, %v194
    %v198 = vlaneseq
    %v199 = vshrl.u32 %v198, 7
    %v200 = vsub.s32 1, %v199
    %v201 = vrot.slane %v191, %v200
    %v202 = vlaneseq
    %v203 = vshrl.u32 %v202, 7
    %v204 = vsub.s32 1, %v203
    %v205 = vrot.slane %v195, %v204
    %v206 = vmul.f32 %v75, %v201
    %v207 = vmul.f32 %v76, %v205
    %v208 = vmul.f32 %v77, %v201
    %v209 = vmul.f32 %v78, %v205
    %v210 = vmul.f32 %v79, %v201
    %v211 = vmul.f32 %v80, %v205
    %v212 = vmul.f32 %v81, %v201
    %v213 = vmul.f32 %v82, %v205
    %v214 = vadd.f32 %v180, %v206
    %v215 = vadd.f32 %v181, %v207
    %v216 = vadd.f32 %v182, %v208
    %v217 = vadd.f32 %v183, %v209
    %v218 = vadd.f32 %v184, %v210
    %v219 = vadd.f32 %v185, %v211
    %v220 = vadd.f32 %v186, %v212
    %v221 = vadd.f32 %v187, %v213
    %v222 = vadd.f32 %v214, %v83
    %v223 = vadd.f32 %v215, %v84
    %v224 = vadd.f32 %v216, %v85
    %v225 = vadd.f32 %v217, %v86
    %v226 = vadd.f32 %v218, %v87
    %v227 = vadd.f32 %v219, %v88
    %v228 = vadd.f32 %v220, %v89
    %v229 = vadd.f32 %v221, %v90
    %v230 = vpack.c.bf16 %v224, %v222
    %v231 = vpack.c.bf16 %v225, %v223
    %v232 = vpack.c.bf16 %v228, %v226
    %v233 = vpack.c.bf16 %v229, %v227
    %v234 = vld [vmem:[#allocation6] sm:$0xff]
    %v235 = vld [vmem:[#allocation6 + $0x8] sm:$0xff]
    %v236 = vld [vmem:[#allocation6 + $0x10] sm:$0xff]
    %v237 = vld [vmem:[#allocation6 + $0x18] sm:$0xff]
    %v238 = vld [vmem:[#allocation6 + $0x20] sm:$0xff]
    %v239 = vld [vmem:[#allocation6 + $0x28] sm:$0xff]
    %v240 = vld [vmem:[#allocation6 + $0x30] sm:$0xff]
    %v241 = vld [vmem:[#allocation6 + $0x38] sm:$0xff]
    %v242 = vld [vmem:[#allocation6 + $0x40] sm:$0xff]
    %v243 = vld [vmem:[#allocation6 + $0x48] sm:$0xff]
    %v244 = vld [vmem:[#allocation6 + $0x50] sm:$0xff]
    %v245 = vld [vmem:[#allocation6 + $0x58] sm:$0xff]
    %v246 = vld [vmem:[#allocation6 + $0x60] sm:$0xff]
    %v247 = vld [vmem:[#allocation6 + $0x68] sm:$0xff]
    %v248 = vld [vmem:[#allocation6 + $0x70] sm:$0xff]
    %v249 = vld [vmem:[#allocation6 + $0x78] sm:$0xff]
    %v250 = vld [vmem:[#allocation6 + $0x80] sm:$0xff]
    %v251 = vld [vmem:[#allocation6 + $0x88] sm:$0xff]
    %v252 = vld [vmem:[#allocation6 + $0x90] sm:$0xff]
    %v253 = vld [vmem:[#allocation6 + $0x98] sm:$0xff]
    %v254 = vld [vmem:[#allocation6 + $0xa0] sm:$0xff]
    %v255 = vld [vmem:[#allocation6 + $0xa8] sm:$0xff]
    %v256 = vld [vmem:[#allocation6 + $0xb0] sm:$0xff]
    %v257 = vld [vmem:[#allocation6 + $0xb8] sm:$0xff]
    %v258 = vld [vmem:[#allocation6 + $0xc0] sm:$0xff]
    %v259 = vld [vmem:[#allocation6 + $0xc8] sm:$0xff]
    %v260 = vld [vmem:[#allocation6 + $0xd0] sm:$0xff]
    %v261 = vld [vmem:[#allocation6 + $0xd8] sm:$0xff]
    %v262 = vld [vmem:[#allocation6 + $0xe0] sm:$0xff]
    %v263 = vld [vmem:[#allocation6 + $0xe8] sm:$0xff]
    %v264 = vld [vmem:[#allocation6 + $0xf0] sm:$0xff]
    %v265 = vld [vmem:[#allocation6 + $0xf8] sm:$0xff]
    %v298 = vunpack.c.l.b16 %v234
    %v299 = vunpack.c.h.b16 %v234
    %v300 = vunpack.c.l.b16 %v235
    %v301 = vunpack.c.h.b16 %v235
    %v302 = vunpack.c.l.b16 %v236
    %v303 = vunpack.c.h.b16 %v236
    %v304 = vunpack.c.l.b16 %v237
    %v305 = vunpack.c.h.b16 %v237
    %v306 = vunpack.c.l.b16 %v238
    %v307 = vunpack.c.h.b16 %v238
    %v308 = vunpack.c.l.b16 %v239
    %v309 = vunpack.c.h.b16 %v239
    %v310 = vunpack.c.l.b16 %v240
    %v311 = vunpack.c.h.b16 %v240
    %v312 = vunpack.c.l.b16 %v241
    %v313 = vunpack.c.h.b16 %v241
    %v314 = vunpack.c.l.b16 %v242
    %v315 = vunpack.c.h.b16 %v242
    %v316 = vunpack.c.l.b16 %v243
    %v317 = vunpack.c.h.b16 %v243
    %v318 = vunpack.c.l.b16 %v244
    %v319 = vunpack.c.h.b16 %v244
    %v320 = vunpack.c.l.b16 %v245
    %v321 = vunpack.c.h.b16 %v245
    %v322 = vunpack.c.l.b16 %v246
    %v323 = vunpack.c.h.b16 %v246
    %v324 = vunpack.c.l.b16 %v247
    %v325 = vunpack.c.h.b16 %v247
    %v326 = vunpack.c.l.b16 %v248
    %v327 = vunpack.c.h.b16 %v248
    %v328 = vunpack.c.l.b16 %v249
    %v329 = vunpack.c.h.b16 %v249
    %v330 = vunpack.c.l.b16 %v250
    %v331 = vunpack.c.h.b16 %v250
    %v332 = vunpack.c.l.b16 %v251
    %v333 = vunpack.c.h.b16 %v251
    %v334 = vunpack.c.l.b16 %v252
    %v335 = vunpack.c.h.b16 %v252
    %v336 = vunpack.c.l.b16 %v253
    %v337 = vunpack.c.h.b16 %v253
    %v338 = vunpack.c.l.b16 %v254
    %v339 = vunpack.c.h.b16 %v254
    %v340 = vunpack.c.l.b16 %v255
    %v341 = vunpack.c.h.b16 %v255
    %v342 = vunpack.c.l.b16 %v256
    %v343 = vunpack.c.h.b16 %v256
    %v344 = vunpack.c.l.b16 %v257
    %v345 = vunpack.c.h.b16 %v257
    %v346 = vunpack.c.l.b16 %v258
    %v347 = vunpack.c.h.b16 %v258
    %v348 = vunpack.c.l.b16 %v259
    %v349 = vunpack.c.h.b16 %v259
    %v350 = vunpack.c.l.b16 %v260
    %v351 = vunpack.c.h.b16 %v260
    %v352 = vunpack.c.l.b16 %v261
    %v353 = vunpack.c.h.b16 %v261
    %v354 = vunpack.c.l.b16 %v262
    %v355 = vunpack.c.h.b16 %v262
    %v356 = vunpack.c.l.b16 %v263
    %v357 = vunpack.c.h.b16 %v263
    %v358 = vunpack.c.l.b16 %v264
    %v359 = vunpack.c.h.b16 %v264
    %v360 = vunpack.c.l.b16 %v265
    %v361 = vunpack.c.h.b16 %v265
    %v362 = vpack.c.b16 %v300, %v298
    %v363 = vpack.c.b16 %v301, %v299
    %v364 = vpack.c.b16 %v304, %v302
    %v365 = vpack.c.b16 %v305, %v303
    %v366 = vpack.c.b16 %v308, %v306
    %v367 = vpack.c.b16 %v309, %v307
    %v368 = vpack.c.b16 %v312, %v310
    %v369 = vpack.c.b16 %v313, %v311
    %v370 = vpack.c.b16 %v316, %v314
    %v371 = vpack.c.b16 %v317, %v315
    %v372 = vpack.c.b16 %v320, %v318
    %v373 = vpack.c.b16 %v321, %v319
    %v374 = vpack.c.b16 %v324, %v322
    %v375 = vpack.c.b16 %v325, %v323
    %v376 = vpack.c.b16 %v328, %v326
    %v377 = vpack.c.b16 %v329, %v327
    %v378 = vpack.c.b16 %v332, %v330
    %v379 = vpack.c.b16 %v333, %v331
    %v380 = vpack.c.b16 %v336, %v334
    %v381 = vpack.c.b16 %v337, %v335
    %v382 = vpack.c.b16 %v340, %v338
    %v383 = vpack.c.b16 %v341, %v339
    %v384 = vpack.c.b16 %v344, %v342
    %v385 = vpack.c.b16 %v345, %v343
    %v386 = vpack.c.b16 %v348, %v346
    %v387 = vpack.c.b16 %v349, %v347
    %v388 = vpack.c.b16 %v352, %v350
    %v389 = vpack.c.b16 %v353, %v351
    %v390 = vpack.c.b16 %v356, %v354
    %v391 = vpack.c.b16 %v357, %v355
    %v392 = vpack.c.b16 %v360, %v358
    %v393 = vpack.c.b16 %v361, %v359
    %426 = vmatprep.subr.bf16.mxu0 %v363
    %427 = vmatpush1.bf16.msra.mxu0 %v362
    %428 = vmatprep.subr.bf16.mxu0 %v365
    %429 = vmatpush1.bf16.msra.mxu0 %v364
    %430 = vmatprep.subr.bf16.mxu0 %v367
    %431 = vmatpush1.bf16.msra.mxu0 %v366
    %432 = vmatprep.subr.bf16.mxu0 %v369
    %433 = vmatpush1.bf16.msra.mxu0 %v368
    %434 = vmatprep.subr.bf16.mxu0 %v371
    %435 = vmatpush1.bf16.msra.mxu0 %v370
    %436 = vmatprep.subr.bf16.mxu0 %v373
    %437 = vmatpush1.bf16.msra.mxu0 %v372
    %438 = vmatprep.subr.bf16.mxu0 %v375
    %439 = vmatpush1.bf16.msra.mxu0 %v374
    %440 = vmatprep.subr.bf16.mxu0 %v377
    %441 = vmatpush1.bf16.msra.mxu0 %v376
    %442 = vmatprep.subr.bf16.mxu0 %v379
    %443 = vmatpush1.bf16.msra.mxu0 %v378
    %444 = vmatprep.subr.bf16.mxu0 %v381
    %445 = vmatpush1.bf16.msra.mxu0 %v380
    %446 = vmatprep.subr.bf16.mxu0 %v383
    %447 = vmatpush1.bf16.msra.mxu0 %v382
    %448 = vmatprep.subr.bf16.mxu0 %v385
    %449 = vmatpush1.bf16.msra.mxu0 %v384
    %450 = vmatprep.subr.bf16.mxu0 %v387
    %451 = vmatpush1.bf16.msra.mxu0 %v386
    %452 = vmatprep.subr.bf16.mxu0 %v389
    %453 = vmatpush1.bf16.msra.mxu0 %v388
    %454 = vmatprep.subr.bf16.mxu0 %v391
    %455 = vmatpush1.bf16.msra.mxu0 %v390
    %456 = vmatprep.subr.bf16.mxu0 %v393
    %457 = vmatpush1.bf16.msra.mxu0 %v392
    %458 = vmatprep.mubr.bf16.mxu0 %v231
    %459 = vmatmul.mubr.bf16.gmra.mrb[0].mxu0 %v230
    %v460 = vpop.f32.mrb[0].mxu0
    %v461 = vadd.f32 0.0, %v460
    %v462 = vpop.f32.mrb[0].mxu0
    %v463 = vadd.f32 0.0, %v462
    %v464 = vpop.f32.mrb[0].mxu0
    %v465 = vadd.f32 0.0, %v464
    %v466 = vpop.f32.mrb[0].mxu0
    %v467 = vadd.f32 0.0, %v466
    %468 = vmatprep.mubr.bf16.mxu0 %v233
    %469 = vmatmul.mubr.bf16.gmra.mrb[0].mxu0 %v232
    %v470 = vpop.f32.mrb[0].mxu0
    %v471 = vadd.f32 0.0, %v470
    %v472 = vpop.f32.mrb[0].mxu0
    %v473 = vadd.f32 0.0, %v472
    %v474 = vpop.f32.mrb[0].mxu0
    %v475 = vadd.f32 0.0, %v474
    %v476 = vpop.f32.mrb[0].mxu0
    %v477 = vadd.f32 0.0, %v476
    %478 = vdwg.mxu0
    %v479 = vlaneseq
    %v480 = vshrl.u32 %v479, 7
    %v481 = vsub.s32 0, %v480
    %v482 = vrot.slane %v155, %v481
    %v483 = vlaneseq
    %v484 = vshrl.u32 %v483, 7
    %v485 = vsub.s32 0, %v484
    %v486 = vrot.slane %v156, %v485
    %v487 = vmul.f32 %v461, %v482
    %v488 = vmul.f32 %v463, %v486
    %v489 = vmul.f32 %v465, %v482
    %v490 = vmul.f32 %v467, %v486
    %v491 = vmul.f32 %v471, %v482
    %v492 = vmul.f32 %v473, %v486
    %v493 = vmul.f32 %v475, %v482
    %v494 = vmul.f32 %v477, %v486
    %v495 = vpack.c.bf16 %v489, %v487
    %v496 = vpack.c.bf16 %v490, %v488
    %v497 = vpack.c.bf16 %v493, %v491
    %v498 = vpack.c.bf16 %v494, %v492
    %499 = vst [vmem:[#allocation2] sm:$0xff] %v495
    %500 = vst [vmem:[#allocation2 + $0x8] sm:$0xff] %v496
    %501 = vst [vmem:[#allocation2 + $0x10] sm:$0xff] %v497
    %502 = vst [vmem:[#allocation2 + $0x18] sm:$0xff] %v498
    %v503 = vlaneseq
    %v504 = vshrl.u32 %v503, 7
    %v505 = vsub.s32 1, %v504
    %v506 = vrot.slane %v155, %v505
    %v507 = vlaneseq
    %v508 = vshrl.u32 %v507, 7
    %v509 = vsub.s32 1, %v508
    %v510 = vrot.slane %v156, %v509
    %v511 = vmul.f32 %v461, %v506
    %v512 = vmul.f32 %v463, %v510
    %v513 = vmul.f32 %v465, %v506
    %v514 = vmul.f32 %v467, %v510
    %v515 = vmul.f32 %v471, %v506
    %v516 = vmul.f32 %v473, %v510
    %v517 = vmul.f32 %v475, %v506
    %v518 = vmul.f32 %v477, %v510
    %v519 = vpack.c.bf16 %v513, %v511
    %v520 = vpack.c.bf16 %v514, %v512
    %v521 = vpack.c.bf16 %v517, %v515
    %v522 = vpack.c.bf16 %v518, %v516
    %523 = vst [vmem:[#allocation2 + $0x20] sm:$0xff] %v519
    %524 = vst [vmem:[#allocation2 + $0x28] sm:$0xff] %v520
    %525 = vst [vmem:[#allocation2 + $0x30] sm:$0xff] %v521
    %526 = vst [vmem:[#allocation2 + $0x38] sm:$0xff] %v522
    %v527 = vlaneseq
    %v528 = vshrl.u32 %v527, 7
    %v529 = vsub.s32 2, %v528
    %v530 = vrot.slane %v155, %v529
    %v531 = vlaneseq
    %v532 = vshrl.u32 %v531, 7
    %v533 = vsub.s32 2, %v532
    %v534 = vrot.slane %v156, %v533
    %v535 = vmul.f32 %v461, %v530
    %v536 = vmul.f32 %v463, %v534
    %v537 = vmul.f32 %v465, %v530
    %v538 = vmul.f32 %v467, %v534
    %v539 = vmul.f32 %v471, %v530
    %v540 = vmul.f32 %v473, %v534
    %v541 = vmul.f32 %v475, %v530
    %v542 = vmul.f32 %v477, %v534
    %v543 = vpack.c.bf16 %v537, %v535
    %v544 = vpack.c.bf16 %v538, %v536
    %v545 = vpack.c.bf16 %v541, %v539
    %v546 = vpack.c.bf16 %v542, %v540
    %547 = vst [vmem:[#allocation2 + $0x40] sm:$0xff] %v543
    %548 = vst [vmem:[#allocation2 + $0x48] sm:$0xff] %v544
    %549 = vst [vmem:[#allocation2 + $0x50] sm:$0xff] %v545
    %550 = vst [vmem:[#allocation2 + $0x58] sm:$0xff] %v546
    %v551 = vlaneseq
    %v552 = vshrl.u32 %v551, 7
    %v553 = vsub.s32 3, %v552
    %v554 = vrot.slane %v155, %v553
    %v555 = vlaneseq
    %v556 = vshrl.u32 %v555, 7
    %v557 = vsub.s32 3, %v556
    %v558 = vrot.slane %v156, %v557
    %v559 = vmul.f32 %v461, %v554
    %v560 = vmul.f32 %v463, %v558
    %v561 = vmul.f32 %v465, %v554
    %v562 = vmul.f32 %v467, %v558
    %v563 = vmul.f32 %v471, %v554
    %v564 = vmul.f32 %v473, %v558
    %v565 = vmul.f32 %v475, %v554
    %v566 = vmul.f32 %v477, %v558
    %v567 = vpack.c.bf16 %v561, %v559
    %v568 = vpack.c.bf16 %v562, %v560
    %v569 = vpack.c.bf16 %v565, %v563
    %v570 = vpack.c.bf16 %v566, %v564
    %571 = vst [vmem:[#allocation2 + $0x60] sm:$0xff] %v567
    %572 = vst [vmem:[#allocation2 + $0x68] sm:$0xff] %v568
    %573 = vst [vmem:[#allocation2 + $0x70] sm:$0xff] %v569
    %574 = vst [vmem:[#allocation2 + $0x78] sm:$0xff] %v570
    %v575 = vlaneseq
    %v576 = vshrl.u32 %v575, 7
    %v577 = vsub.s32 4, %v576
    %v578 = vrot.slane %v155, %v577
    %v579 = vlaneseq
    %v580 = vshrl.u32 %v579, 7
    %v581 = vsub.s32 4, %v580
    %v582 = vrot.slane %v156, %v581
    %v583 = vmul.f32 %v461, %v578
    %v584 = vmul.f32 %v463, %v582
    %v585 = vmul.f32 %v465, %v578
    %v586 = vmul.f32 %v467, %v582
    %v587 = vmul.f32 %v471, %v578
    %v588 = vmul.f32 %v473, %v582
    %v589 = vmul.f32 %v475, %v578
    %v590 = vmul.f32 %v477, %v582
    %v591 = vpack.c.bf16 %v585, %v583
    %v592 = vpack.c.bf16 %v586, %v584
    %v593 = vpack.c.bf16 %v589, %v587
    %v594 = vpack.c.bf16 %v590, %v588
    %595 = vst [vmem:[#allocation2 + $0x80] sm:$0xff] %v591
    %596 = vst [vmem:[#allocation2 + $0x88] sm:$0xff] %v592
    %597 = vst [vmem:[#allocation2 + $0x90] sm:$0xff] %v593
    %598 = vst [vmem:[#allocation2 + $0x98] sm:$0xff] %v594
    %v599 = vlaneseq
    %v600 = vshrl.u32 %v599, 7
    %v601 = vsub.s32 5, %v600
    %v602 = vrot.slane %v155, %v601
    %v603 = vlaneseq
    %v604 = vshrl.u32 %v603, 7
    %v605 = vsub.s32 5, %v604
    %v606 = vrot.slane %v156, %v605
    %v607 = vmul.f32 %v461, %v602
    %v608 = vmul.f32 %v463, %v606
    %v609 = vmul.f32 %v465, %v602
    %v610 = vmul.f32 %v467, %v606
    %v611 = vmul.f32 %v471, %v602
    %v612 = vmul.f32 %v473, %v606
    %v613 = vmul.f32 %v475, %v602
    %v614 = vmul.f32 %v477, %v606
    %v615 = vpack.c.bf16 %v609, %v607
    %v616 = vpack.c.bf16 %v610, %v608
    %v617 = vpack.c.bf16 %v613, %v611
    %v618 = vpack.c.bf16 %v614, %v612
    %619 = vst [vmem:[#allocation2 + $0xa0] sm:$0xff] %v615
    %620 = vst [vmem:[#allocation2 + $0xa8] sm:$0xff] %v616
    %621 = vst [vmem:[#allocation2 + $0xb0] sm:$0xff] %v617
    %622 = vst [vmem:[#allocation2 + $0xb8] sm:$0xff] %v618
    %v623 = vlaneseq
    %v624 = vshrl.u32 %v623, 7
    %v625 = vsub.s32 6, %v624
    %v626 = vrot.slane %v155, %v625
    %v627 = vlaneseq
    %v628 = vshrl.u32 %v627, 7
    %v629 = vsub.s32 6, %v628
    %v630 = vrot.slane %v156, %v629
    %v631 = vmul.f32 %v461, %v626
    %v632 = vmul.f32 %v463, %v630
    %v633 = vmul.f32 %v465, %v626
    %v634 = vmul.f32 %v467, %v630
    %v635 = vmul.f32 %v471, %v626
    %v636 = vmul.f32 %v473, %v630
    %v637 = vmul.f32 %v475, %v626
    %v638 = vmul.f32 %v477, %v630
    %v639 = vpack.c.bf16 %v633, %v631
    %v640 = vpack.c.bf16 %v634, %v632
    %v641 = vpack.c.bf16 %v637, %v635
    %v642 = vpack.c.bf16 %v638, %v636
    %643 = vst [vmem:[#allocation2 + $0xc0] sm:$0xff] %v639
    %644 = vst [vmem:[#allocation2 + $0xc8] sm:$0xff] %v640
    %645 = vst [vmem:[#allocation2 + $0xd0] sm:$0xff] %v641
    %646 = vst [vmem:[#allocation2 + $0xd8] sm:$0xff] %v642
    %v647 = vlaneseq
    %v648 = vshrl.u32 %v647, 7
    %v649 = vsub.s32 7, %v648
    %v650 = vrot.slane %v155, %v649
    %v651 = vlaneseq
    %v652 = vshrl.u32 %v651, 7
    %v653 = vsub.s32 7, %v652
    %v654 = vrot.slane %v156, %v653
    %v655 = vmul.f32 %v461, %v650
    %v656 = vmul.f32 %v463, %v654
    %v657 = vmul.f32 %v465, %v650
    %v658 = vmul.f32 %v467, %v654
    %v659 = vmul.f32 %v471, %v650
    %v660 = vmul.f32 %v473, %v654
    %v661 = vmul.f32 %v475, %v650
    %v662 = vmul.f32 %v477, %v654
    %v663 = vpack.c.bf16 %v657, %v655
    %v664 = vpack.c.bf16 %v658, %v656
    %v665 = vpack.c.bf16 %v661, %v659
    %v666 = vpack.c.bf16 %v662, %v660
    %667 = vst [vmem:[#allocation2 + $0xe0] sm:$0xff] %v663
    %668 = vst [vmem:[#allocation2 + $0xe8] sm:$0xff] %v664
    %669 = vst [vmem:[#allocation2 + $0xf0] sm:$0xff] %v665
    %670 = vst [vmem:[#allocation2 + $0xf8] sm:$0xff] %v666
    %v671 = vlaneseq
    %v672 = vshrl.u32 %v671, 7
    %v673 = vsub.s32 0, %v672
    %v674 = vrot.slane %v157, %v673
    %v675 = vlaneseq
    %v676 = vshrl.u32 %v675, 7
    %v677 = vsub.s32 0, %v676
    %v678 = vrot.slane %v158, %v677
    %v679 = vmul.f32 %v461, %v674
    %v680 = vmul.f32 %v463, %v678
    %v681 = vmul.f32 %v465, %v674
    %v682 = vmul.f32 %v467, %v678
    %v683 = vmul.f32 %v471, %v674
    %v684 = vmul.f32 %v473, %v678
    %v685 = vmul.f32 %v475, %v674
    %v686 = vmul.f32 %v477, %v678
    %v687 = vpack.c.bf16 %v681, %v679
    %v688 = vpack.c.bf16 %v682, %v680
    %v689 = vpack.c.bf16 %v685, %v683
    %v690 = vpack.c.bf16 %v686, %v684
    %691 = vst [vmem:[#allocation2 + $0x100] sm:$0xff] %v687
    %692 = vst [vmem:[#allocation2 + $0x108] sm:$0xff] %v688
    %693 = vst [vmem:[#allocation2 + $0x110] sm:$0xff] %v689
    %694 = vst [vmem:[#allocation2 + $0x118] sm:$0xff] %v690
    %v695 = vlaneseq
    %v696 = vshrl.u32 %v695, 7
    %v697 = vsub.s32 1, %v696
    %v698 = vrot.slane %v157, %v697
    %v699 = vlaneseq
    %v700 = vshrl.u32 %v699, 7
    %v701 = vsub.s32 1, %v700
    %v702 = vrot.slane %v158, %v701
    %v703 = vmul.f32 %v461, %v698
    %v704 = vmul.f32 %v463, %v702
    %v705 = vmul.f32 %v465, %v698
    %v706 = vmul.f32 %v467, %v702
    %v707 = vmul.f32 %v471, %v698
    %v708 = vmul.f32 %v473, %v702
    %v709 = vmul.f32 %v475, %v698
    %v710 = vmul.f32 %v477, %v702
    %v711 = vpack.c.bf16 %v705, %v703
    %v712 = vpack.c.bf16 %v706, %v704
    %v713 = vpack.c.bf16 %v709, %v707
    %v714 = vpack.c.bf16 %v710, %v708
    %715 = vst [vmem:[#allocation2 + $0x120] sm:$0xff] %v711
    %716 = vst [vmem:[#allocation2 + $0x128] sm:$0xff] %v712
    %717 = vst [vmem:[#allocation2 + $0x130] sm:$0xff] %v713
    %718 = vst [vmem:[#allocation2 + $0x138] sm:$0xff] %v714
    %v719 = vlaneseq
    %v720 = vshrl.u32 %v719, 7
    %v721 = vsub.s32 2, %v720
    %v722 = vrot.slane %v157, %v721
    %v723 = vlaneseq
    %v724 = vshrl.u32 %v723, 7
    %v725 = vsub.s32 2, %v724
    %v726 = vrot.slane %v158, %v725
    %v727 = vmul.f32 %v461, %v722
    %v728 = vmul.f32 %v463, %v726
    %v729 = vmul.f32 %v465, %v722
    %v730 = vmul.f32 %v467, %v726
    %v731 = vmul.f32 %v471, %v722
    %v732 = vmul.f32 %v473, %v726
    %v733 = vmul.f32 %v475, %v722
    %v734 = vmul.f32 %v477, %v726
    %v735 = vpack.c.bf16 %v729, %v727
    %v736 = vpack.c.bf16 %v730, %v728
    %v737 = vpack.c.bf16 %v733, %v731
    %v738 = vpack.c.bf16 %v734, %v732
    %739 = vst [vmem:[#allocation2 + $0x140] sm:$0xff] %v735
    %740 = vst [vmem:[#allocation2 + $0x148] sm:$0xff] %v736
    %741 = vst [vmem:[#allocation2 + $0x150] sm:$0xff] %v737
    %742 = vst [vmem:[#allocation2 + $0x158] sm:$0xff] %v738
    %v743 = vlaneseq
    %v744 = vshrl.u32 %v743, 7
    %v745 = vsub.s32 3, %v744
    %v746 = vrot.slane %v157, %v745
    %v747 = vlaneseq
    %v748 = vshrl.u32 %v747, 7
    %v749 = vsub.s32 3, %v748
    %v750 = vrot.slane %v158, %v749
    %v751 = vmul.f32 %v461, %v746
    %v752 = vmul.f32 %v463, %v750
    %v753 = vmul.f32 %v465, %v746
    %v754 = vmul.f32 %v467, %v750
    %v755 = vmul.f32 %v471, %v746
    %v756 = vmul.f32 %v473, %v750
    %v757 = vmul.f32 %v475, %v746
    %v758 = vmul.f32 %v477, %v750
    %v759 = vpack.c.bf16 %v753, %v751
    %v760 = vpack.c.bf16 %v754, %v752
    %v761 = vpack.c.bf16 %v757, %v755
    %v762 = vpack.c.bf16 %v758, %v756
    %763 = vst [vmem:[#allocation2 + $0x160] sm:$0xff] %v759
    %764 = vst [vmem:[#allocation2 + $0x168] sm:$0xff] %v760
    %765 = vst [vmem:[#allocation2 + $0x170] sm:$0xff] %v761
    %766 = vst [vmem:[#allocation2 + $0x178] sm:$0xff] %v762
    %v767 = vlaneseq
    %v768 = vshrl.u32 %v767, 7
    %v769 = vsub.s32 4, %v768
    %v770 = vrot.slane %v157, %v769
    %v771 = vlaneseq
    %v772 = vshrl.u32 %v771, 7
    %v773 = vsub.s32 4, %v772
    %v774 = vrot.slane %v158, %v773
    %v775 = vmul.f32 %v461, %v770
    %v776 = vmul.f32 %v463, %v774
    %v777 = vmul.f32 %v465, %v770
    %v778 = vmul.f32 %v467, %v774
    %v779 = vmul.f32 %v471, %v770
    %v780 = vmul.f32 %v473, %v774
    %v781 = vmul.f32 %v475, %v770
    %v782 = vmul.f32 %v477, %v774
    %v783 = vpack.c.bf16 %v777, %v775
    %v784 = vpack.c.bf16 %v778, %v776
    %v785 = vpack.c.bf16 %v781, %v779
    %v786 = vpack.c.bf16 %v782, %v780
    %787 = vst [vmem:[#allocation2 + $0x180] sm:$0xff] %v783
    %788 = vst [vmem:[#allocation2 + $0x188] sm:$0xff] %v784
    %789 = vst [vmem:[#allocation2 + $0x190] sm:$0xff] %v785
    %790 = vst [vmem:[#allocation2 + $0x198] sm:$0xff] %v786
    %v791 = vlaneseq
    %v792 = vshrl.u32 %v791, 7
    %v793 = vsub.s32 5, %v792
    %v794 = vrot.slane %v157, %v793
    %v795 = vlaneseq
    %v796 = vshrl.u32 %v795, 7
    %v797 = vsub.s32 5, %v796
    %v798 = vrot.slane %v158, %v797
    %v799 = vmul.f32 %v461, %v794
    %v800 = vmul.f32 %v463, %v798
    %v801 = vmul.f32 %v465, %v794
    %v802 = vmul.f32 %v467, %v798
    %v803 = vmul.f32 %v471, %v794
    %v804 = vmul.f32 %v473, %v798
    %v805 = vmul.f32 %v475, %v794
    %v806 = vmul.f32 %v477, %v798
    %v807 = vpack.c.bf16 %v801, %v799
    %v808 = vpack.c.bf16 %v802, %v800
    %v809 = vpack.c.bf16 %v805, %v803
    %v810 = vpack.c.bf16 %v806, %v804
    %811 = vst [vmem:[#allocation2 + $0x1a0] sm:$0xff] %v807
    %812 = vst [vmem:[#allocation2 + $0x1a8] sm:$0xff] %v808
    %813 = vst [vmem:[#allocation2 + $0x1b0] sm:$0xff] %v809
    %814 = vst [vmem:[#allocation2 + $0x1b8] sm:$0xff] %v810
    %v815 = vlaneseq
    %v816 = vshrl.u32 %v815, 7
    %v817 = vsub.s32 6, %v816
    %v818 = vrot.slane %v157, %v817
    %v819 = vlaneseq
    %v820 = vshrl.u32 %v819, 7
    %v821 = vsub.s32 6, %v820
    %v822 = vrot.slane %v158, %v821
    %v823 = vmul.f32 %v461, %v818
    %v824 = vmul.f32 %v463, %v822
    %v825 = vmul.f32 %v465, %v818
    %v826 = vmul.f32 %v467, %v822
    %v827 = vmul.f32 %v471, %v818
    %v828 = vmul.f32 %v473, %v822
    %v829 = vmul.f32 %v475, %v818
    %v830 = vmul.f32 %v477, %v822
    %v831 = vpack.c.bf16 %v825, %v823
    %v832 = vpack.c.bf16 %v826, %v824
    %v833 = vpack.c.bf16 %v829, %v827
    %v834 = vpack.c.bf16 %v830, %v828
    %835 = vst [vmem:[#allocation2 + $0x1c0] sm:$0xff] %v831
    %836 = vst [vmem:[#allocation2 + $0x1c8] sm:$0xff] %v832
    %837 = vst [vmem:[#allocation2 + $0x1d0] sm:$0xff] %v833
    %838 = vst [vmem:[#allocation2 + $0x1d8] sm:$0xff] %v834
    %v839 = vlaneseq
    %v840 = vshrl.u32 %v839, 7
    %v841 = vsub.s32 7, %v840
    %v842 = vrot.slane %v157, %v841
    %v843 = vlaneseq
    %v844 = vshrl.u32 %v843, 7
    %v845 = vsub.s32 7, %v844
    %v846 = vrot.slane %v158, %v845
    %v847 = vmul.f32 %v461, %v842
    %v848 = vmul.f32 %v463, %v846
    %v849 = vmul.f32 %v465, %v842
    %v850 = vmul.f32 %v467, %v846
    %v851 = vmul.f32 %v471, %v842
    %v852 = vmul.f32 %v473, %v846
    %v853 = vmul.f32 %v475, %v842
    %v854 = vmul.f32 %v477, %v846
    %v855 = vpack.c.bf16 %v849, %v847
    %v856 = vpack.c.bf16 %v850, %v848
    %v857 = vpack.c.bf16 %v853, %v851
    %v858 = vpack.c.bf16 %v854, %v852
    %859 = vst [vmem:[#allocation2 + $0x1e0] sm:$0xff] %v855
    %860 = vst [vmem:[#allocation2 + $0x1e8] sm:$0xff] %v856
    %861 = vst [vmem:[#allocation2 + $0x1f0] sm:$0xff] %v857
    %862 = vst [vmem:[#allocation2 + $0x1f8] sm:$0xff] %v858
    %v863 = vld [vmem:[%s3] sm:$0xff]
    %v864 = vld [vmem:[%s3 + $0x8] sm:$0xff]
    %v865 = vld [vmem:[%s3 + $0x10] sm:$0xff]
    %v866 = vld [vmem:[%s3 + $0x18] sm:$0xff]
    %v867 = vld [vmem:[%s3 + $0x20] sm:$0xff]
    %v868 = vld [vmem:[%s3 + $0x28] sm:$0xff]
    %v869 = vld [vmem:[%s3 + $0x30] sm:$0xff]
    %v870 = vld [vmem:[%s3 + $0x38] sm:$0xff]
    %v871 = vld [vmem:[#allocation2] sm:$0xff]
    %v872 = vld [vmem:[#allocation2 + $0x8] sm:$0xff]
    %v873 = vld [vmem:[#allocation2 + $0x10] sm:$0xff]
    %v874 = vld [vmem:[#allocation2 + $0x18] sm:$0xff]
    %v875 = vld [vmem:[#allocation2 + $0x20] sm:$0xff]
    %v876 = vld [vmem:[#allocation2 + $0x28] sm:$0xff]
    %v877 = vld [vmem:[#allocation2 + $0x30] sm:$0xff]
    %v878 = vld [vmem:[#allocation2 + $0x38] sm:$0xff]
    %v879 = vld [vmem:[#allocation2 + $0x40] sm:$0xff]
    %v880 = vld [vmem:[#allocation2 + $0x48] sm:$0xff]
    %v881 = vld [vmem:[#allocation2 + $0x50] sm:$0xff]
    %v882 = vld [vmem:[#allocation2 + $0x58] sm:$0xff]
    %v883 = vld [vmem:[#allocation2 + $0x60] sm:$0xff]
    %v884 = vld [vmem:[#allocation2 + $0x68] sm:$0xff]
    %v885 = vld [vmem:[#allocation2 + $0x70] sm:$0xff]
    %v886 = vld [vmem:[#allocation2 + $0x78] sm:$0xff]
    %v887 = vld [vmem:[#allocation2 + $0x80] sm:$0xff]
    %v888 = vld [vmem:[#allocation2 + $0x88] sm:$0xff]
    %v889 = vld [vmem:[#allocation2 + $0x90] sm:$0xff]
    %v890 = vld [vmem:[#allocation2 + $0x98] sm:$0xff]
    %v891 = vld [vmem:[#allocation2 + $0xa0] sm:$0xff]
    %v892 = vld [vmem:[#allocation2 + $0xa8] sm:$0xff]
    %v893 = vld [vmem:[#allocation2 + $0xb0] sm:$0xff]
    %v894 = vld [vmem:[#allocation2 + $0xb8] sm:$0xff]
    %v895 = vld [vmem:[#allocation2 + $0xc0] sm:$0xff]
    %v896 = vld [vmem:[#allocation2 + $0xc8] sm:$0xff]
    %v897 = vld [vmem:[#allocation2 + $0xd0] sm:$0xff]
    %v898 = vld [vmem:[#allocation2 + $0xd8] sm:$0xff]
    %v899 = vld [vmem:[#allocation2 + $0xe0] sm:$0xff]
    %v900 = vld [vmem:[#allocation2 + $0xe8] sm:$0xff]
    %v901 = vld [vmem:[#allocation2 + $0xf0] sm:$0xff]
    %v902 = vld [vmem:[#allocation2 + $0xf8] sm:$0xff]
    %v903 = vld [vmem:[#allocation2 + $0x100] sm:$0xff]
    %v904 = vld [vmem:[#allocation2 + $0x108] sm:$0xff]
    %v905 = vld [vmem:[#allocation2 + $0x110] sm:$0xff]
    %v906 = vld [vmem:[#allocation2 + $0x118] sm:$0xff]
    %v907 = vld [vmem:[#allocation2 + $0x120] sm:$0xff]
    %v908 = vld [vmem:[#allocation2 + $0x128] sm:$0xff]
    %v909 = vld [vmem:[#allocation2 + $0x130] sm:$0xff]
    %v910 = vld [vmem:[#allocation2 + $0x138] sm:$0xff]
    %v911 = vld [vmem:[#allocation2 + $0x140] sm:$0xff]
    %v912 = vld [vmem:[#allocation2 + $0x148] sm:$0xff]
    %v913 = vld [vmem:[#allocation2 + $0x150] sm:$0xff]
    %v914 = vld [vmem:[#allocation2 + $0x158] sm:$0xff]
    %v915 = vld [vmem:[#allocation2 + $0x160] sm:$0xff]
    %v916 = vld [vmem:[#allocation2 + $0x168] sm:$0xff]
    %v917 = vld [vmem:[#allocation2 + $0x170] sm:$0xff]
    %v918 = vld [vmem:[#allocation2 + $0x178] sm:$0xff]
    %v919 = vld [vmem:[#allocation2 + $0x180] sm:$0xff]
    %v920 = vld [vmem:[#allocation2 + $0x188] sm:$0xff]
    %v921 = vld [vmem:[#allocation2 + $0x190] sm:$0xff]
    %v922 = vld [vmem:[#allocation2 + $0x198] sm:$0xff]
    %v923 = vld [vmem:[#allocation2 + $0x1a0] sm:$0xff]
    %v924 = vld [vmem:[#allocation2 + $0x1a8] sm:$0xff]
    %v925 = vld [vmem:[#allocation2 + $0x1b0] sm:$0xff]
    %v926 = vld [vmem:[#allocation2 + $0x1b8] sm:$0xff]
    %v927 = vld [vmem:[#allocation2 + $0x1c0] sm:$0xff]
    %v928 = vld [vmem:[#allocation2 + $0x1c8] sm:$0xff]
    %v929 = vld [vmem:[#allocation2 + $0x1d0] sm:$0xff]
    %v930 = vld [vmem:[#allocation2 + $0x1d8] sm:$0xff]
    %v931 = vld [vmem:[#allocation2 + $0x1e0] sm:$0xff]
    %v932 = vld [vmem:[#allocation2 + $0x1e8] sm:$0xff]
    %v933 = vld [vmem:[#allocation2 + $0x1f0] sm:$0xff]
    %v934 = vld [vmem:[#allocation2 + $0x1f8] sm:$0xff]
    %v943 = vunpack.c.l.b16 %v863
    %v944 = vunpack.c.h.b16 %v863
    %v945 = vunpack.c.l.b16 %v864
    %v946 = vunpack.c.h.b16 %v864
    %v947 = vunpack.c.l.b16 %v865
    %v948 = vunpack.c.h.b16 %v865
    %v949 = vunpack.c.l.b16 %v866
    %v950 = vunpack.c.h.b16 %v866
    %v951 = vunpack.c.l.b16 %v867
    %v952 = vunpack.c.h.b16 %v867
    %v953 = vunpack.c.l.b16 %v868
    %v954 = vunpack.c.h.b16 %v868
    %v955 = vunpack.c.l.b16 %v869
    %v956 = vunpack.c.h.b16 %v869
    %v957 = vunpack.c.l.b16 %v870
    %v958 = vunpack.c.h.b16 %v870
    %v959 = vpack.c.b16 %v947, %v943
    %v960 = vpack.c.b16 %v948, %v944
    %v961 = vpack.c.b16 %v949, %v945
    %v962 = vpack.c.b16 %v950, %v946
    %v963 = vpack.c.b16 %v955, %v951
    %v964 = vpack.c.b16 %v956, %v952
    %v965 = vpack.c.b16 %v957, %v953
    %v966 = vpack.c.b16 %v958, %v954
    %975 = vmatprep.subr.bf16.mxu0 %v872
    %976 = vmatpush1.bf16.msra.mxu0 %v871
    %977 = vmatprep.subr.bf16.mxu0 %v874
    %978 = vmatpush1.bf16.msra.mxu0 %v873
    %979 = vmatprep.subr.bf16.mxu0 %v876
    %980 = vmatpush1.bf16.msra.mxu0 %v875
    %981 = vmatprep.subr.bf16.mxu0 %v878
    %982 = vmatpush1.bf16.msra.mxu0 %v877
    %983 = vmatprep.subr.bf16.mxu0 %v880
    %984 = vmatpush1.bf16.msra.mxu0 %v879
    %985 = vmatprep.subr.bf16.mxu0 %v882
    %986 = vmatpush1.bf16.msra.mxu0 %v881
    %987 = vmatprep.subr.bf16.mxu0 %v884
    %988 = vmatpush1.bf16.msra.mxu0 %v883
    %989 = vmatprep.subr.bf16.mxu0 %v886
    %990 = vmatpush1.bf16.msra.mxu0 %v885
    %991 = vmatprep.subr.bf16.mxu0 %v888
    %992 = vmatpush1.bf16.msra.mxu0 %v887
    %993 = vmatprep.subr.bf16.mxu0 %v890
    %994 = vmatpush1.bf16.msra.mxu0 %v889
    %995 = vmatprep.subr.bf16.mxu0 %v892
    %996 = vmatpush1.bf16.msra.mxu0 %v891
    %997 = vmatprep.subr.bf16.mxu0 %v894
    %998 = vmatpush1.bf16.msra.mxu0 %v893
    %999 = vmatprep.subr.bf16.mxu0 %v896
    %1000 = vmatpush1.bf16.msra.mxu0 %v895
    %1001 = vmatprep.subr.bf16.mxu0 %v898
    %1002 = vmatpush1.bf16.msra.mxu0 %v897
    %1003 = vmatprep.subr.bf16.mxu0 %v900
    %1004 = vmatpush1.bf16.msra.mxu0 %v899
    %1005 = vmatprep.subr.bf16.mxu0 %v902
    %1006 = vmatpush1.bf16.msra.mxu0 %v901
    %1007 = vmatprep.mubr.bf16.mxu0 %v960
    %1008 = vmatmul.mubr.bf16.gmra.mrb[0].mxu0 %v959
    %v1009 = vpop.f32.mrb[0].mxu0
    %v1010 = vadd.f32 0.0, %v1009
    %v1011 = vpop.f32.mrb[0].mxu0
    %v1012 = vadd.f32 0.0, %v1011
    %v1013 = vpop.f32.mrb[0].mxu0
    %v1014 = vadd.f32 0.0, %v1013
    %v1015 = vpop.f32.mrb[0].mxu0
    %v1016 = vadd.f32 0.0, %v1015
    %1017 = vmatprep.mubr.bf16.mxu0 %v964
    %1018 = vmatmul.mubr.bf16.gmra.mrb[0].mxu0 %v963
    %v1019 = vpop.f32.mrb[0].mxu0
    %v1020 = vadd.f32 0.0, %v1019
    %v1021 = vpop.f32.mrb[0].mxu0
    %v1022 = vadd.f32 0.0, %v1021
    %v1023 = vpop.f32.mrb[0].mxu0
    %v1024 = vadd.f32 0.0, %v1023
    %v1025 = vpop.f32.mrb[0].mxu0
    %v1026 = vadd.f32 0.0, %v1025
    %1027 = vdwg.mxu0
    %1028 = vmatprep.subr.bf16.mxu0 %v904
    %1029 = vmatpush1.bf16.msra.mxu0 %v903
    %1030 = vmatprep.subr.bf16.mxu0 %v906
    %1031 = vmatpush1.bf16.msra.mxu0 %v905
    %1032 = vmatprep.subr.bf16.mxu0 %v908
    %1033 = vmatpush1.bf16.msra.mxu0 %v907
    %1034 = vmatprep.subr.bf16.mxu0 %v910
    %1035 = vmatpush1.bf16.msra.mxu0 %v909
    %1036 = vmatprep.subr.bf16.mxu0 %v912
    %1037 = vmatpush1.bf16.msra.mxu0 %v911
    %1038 = vmatprep.subr.bf16.mxu0 %v914
    %1039 = vmatpush1.bf16.msra.mxu0 %v913
    %1040 = vmatprep.subr.bf16.mxu0 %v916
    %1041 = vmatpush1.bf16.msra.mxu0 %v915
    %1042 = vmatprep.subr.bf16.mxu0 %v918
    %1043 = vmatpush1.bf16.msra.mxu0 %v917
    %1044 = vmatprep.subr.bf16.mxu0 %v920
    %1045 = vmatpush1.bf16.msra.mxu0 %v919
    %1046 = vmatprep.subr.bf16.mxu0 %v922
    %1047 = vmatpush1.bf16.msra.mxu0 %v921
    %1048 = vmatprep.subr.bf16.mxu0 %v924
    %1049 = vmatpush1.bf16.msra.mxu0 %v923
    %1050 = vmatprep.subr.bf16.mxu0 %v926
    %1051 = vmatpush1.bf16.msra.mxu0 %v925
    %1052 = vmatprep.subr.bf16.mxu0 %v928
    %1053 = vmatpush1.bf16.msra.mxu0 %v927
    %1054 = vmatprep.subr.bf16.mxu0 %v930
    %1055 = vmatpush1.bf16.msra.mxu0 %v929
    %1056 = vmatprep.subr.bf16.mxu0 %v932
    %1057 = vmatpush1.bf16.msra.mxu0 %v931
    %1058 = vmatprep.subr.bf16.mxu0 %v934
    %1059 = vmatpush1.bf16.msra.mxu0 %v933
    %1060 = vmatprep.mubr.bf16.mxu0 %v962
    %1061 = vmatmul.mubr.bf16.gmra.mrb[0].mxu0 %v961
    %v1062 = vpop.f32.mrb[0].mxu0
    %v1063 = vadd.f32 %v1010, %v1062
    %v1064 = vpop.f32.mrb[0].mxu0
    %v1065 = vadd.f32 %v1012, %v1064
    %v1066 = vpop.f32.mrb[0].mxu0
    %v1067 = vadd.f32 %v1014, %v1066
    %v1068 = vpop.f32.mrb[0].mxu0
    %v1069 = vadd.f32 %v1016, %v1068
    %1070 = vmatprep.mubr.bf16.mxu0 %v966
    %1071 = vmatmul.mubr.bf16.gmra.mrb[0].mxu0 %v965
    %v1072 = vpop.f32.mrb[0].mxu0
    %v1073 = vadd.f32 %v1020, %v1072
    %v1074 = vpop.f32.mrb[0].mxu0
    %v1075 = vadd.f32 %v1022, %v1074
    %v1076 = vpop.f32.mrb[0].mxu0
    %v1077 = vadd.f32 %v1024, %v1076
    %v1078 = vpop.f32.mrb[0].mxu0
    %v1079 = vadd.f32 %v1026, %v1078
    %1080 = vdwg.mxu0
    %v1081 = vpack.c.bf16 %v1067, %v1063
    %v1082 = vpack.c.bf16 %v1069, %v1065
    %v1083 = vpack.c.bf16 %v1077, %v1073
    %v1084 = vpack.c.bf16 %v1079, %v1075
    %v1085 = vld [vmem:[#allocation8] sm:$0xff]
    %v1086 = vld [vmem:[#allocation8 + $0x8] sm:$0xff]
    %v1087 = vld [vmem:[#allocation8 + $0x10] sm:$0xff]
    %v1088 = vld [vmem:[#allocation8 + $0x18] sm:$0xff]
    %v1089 = vld [vmem:[#allocation8 + $0x20] sm:$0xff]
    %v1090 = vld [vmem:[#allocation8 + $0x28] sm:$0xff]
    %v1091 = vld [vmem:[#allocation8 + $0x30] sm:$0xff]
    %v1092 = vld [vmem:[#allocation8 + $0x38] sm:$0xff]
    %v1093 = vld [vmem:[#allocation8 + $0x40] sm:$0xff]
    %v1094 = vld [vmem:[#allocation8 + $0x48] sm:$0xff]
    %v1095 = vld [vmem:[#allocation8 + $0x50] sm:$0xff]
    %v1096 = vld [vmem:[#allocation8 + $0x58] sm:$0xff]
    %v1097 = vld [vmem:[#allocation8 + $0x60] sm:$0xff]
    %v1098 = vld [vmem:[#allocation8 + $0x68] sm:$0xff]
    %v1099 = vld [vmem:[#allocation8 + $0x70] sm:$0xff]
    %v1100 = vld [vmem:[#allocation8 + $0x78] sm:$0xff]
    %v1101 = vld [vmem:[#allocation8 + $0x80] sm:$0xff]
    %v1102 = vld [vmem:[#allocation8 + $0x88] sm:$0xff]
    %v1103 = vld [vmem:[#allocation8 + $0x90] sm:$0xff]
    %v1104 = vld [vmem:[#allocation8 + $0x98] sm:$0xff]
    %v1105 = vld [vmem:[#allocation8 + $0xa0] sm:$0xff]
    %v1106 = vld [vmem:[#allocation8 + $0xa8] sm:$0xff]
    %v1107 = vld [vmem:[#allocation8 + $0xb0] sm:$0xff]
    %v1108 = vld [vmem:[#allocation8 + $0xb8] sm:$0xff]
    %v1109 = vld [vmem:[#allocation8 + $0xc0] sm:$0xff]
    %v1110 = vld [vmem:[#allocation8 + $0xc8] sm:$0xff]
    %v1111 = vld [vmem:[#allocation8 + $0xd0] sm:$0xff]
    %v1112 = vld [vmem:[#allocation8 + $0xd8] sm:$0xff]
    %v1113 = vld [vmem:[#allocation8 + $0xe0] sm:$0xff]
    %v1114 = vld [vmem:[#allocation8 + $0xe8] sm:$0xff]
    %v1115 = vld [vmem:[#allocation8 + $0xf0] sm:$0xff]
    %v1116 = vld [vmem:[#allocation8 + $0xf8] sm:$0xff]
    %v1149 = vunpack.c.l.b16 %v1085
    %v1150 = vunpack.c.h.b16 %v1085
    %v1151 = vunpack.c.l.b16 %v1086
    %v1152 = vunpack.c.h.b16 %v1086
    %v1153 = vunpack.c.l.b16 %v1087
    %v1154 = vunpack.c.h.b16 %v1087
    %v1155 = vunpack.c.l.b16 %v1088
    %v1156 = vunpack.c.h.b16 %v1088
    %v1157 = vunpack.c.l.b16 %v1089
    %v1158 = vunpack.c.h.b16 %v1089
    %v1159 = vunpack.c.l.b16 %v1090
    %v1160 = vunpack.c.h.b16 %v1090
    %v1161 = vunpack.c.l.b16 %v1091
    %v1162 = vunpack.c.h.b16 %v1091
    %v1163 = vunpack.c.l.b16 %v1092
    %v1164 = vunpack.c.h.b16 %v1092
    %v1165 = vunpack.c.l.b16 %v1093
    %v1166 = vunpack.c.h.b16 %v1093
    %v1167 = vunpack.c.l.b16 %v1094
    %v1168 = vunpack.c.h.b16 %v1094
    %v1169 = vunpack.c.l.b16 %v1095
    %v1170 = vunpack.c.h.b16 %v1095
    %v1171 = vunpack.c.l.b16 %v1096
    %v1172 = vunpack.c.h.b16 %v1096
    %v1173 = vunpack.c.l.b16 %v1097
    %v1174 = vunpack.c.h.b16 %v1097
    %v1175 = vunpack.c.l.b16 %v1098
    %v1176 = vunpack.c.h.b16 %v1098
    %v1177 = vunpack.c.l.b16 %v1099
    %v1178 = vunpack.c.h.b16 %v1099
    %v1179 = vunpack.c.l.b16 %v1100
    %v1180 = vunpack.c.h.b16 %v1100
    %v1181 = vunpack.c.l.b16 %v1101
    %v1182 = vunpack.c.h.b16 %v1101
    %v1183 = vunpack.c.l.b16 %v1102
    %v1184 = vunpack.c.h.b16 %v1102
    %v1185 = vunpack.c.l.b16 %v1103
    %v1186 = vunpack.c.h.b16 %v1103
    %v1187 = vunpack.c.l.b16 %v1104
    %v1188 = vunpack.c.h.b16 %v1104
    %v1189 = vunpack.c.l.b16 %v1105
    %v1190 = vunpack.c.h.b16 %v1105
    %v1191 = vunpack.c.l.b16 %v1106
    %v1192 = vunpack.c.h.b16 %v1106
    %v1193 = vunpack.c.l.b16 %v1107
    %v1194 = vunpack.c.h.b16 %v1107
    %v1195 = vunpack.c.l.b16 %v1108
    %v1196 = vunpack.c.h.b16 %v1108
    %v1197 = vunpack.c.l.b16 %v1109
    %v1198 = vunpack.c.h.b16 %v1109
    %v1199 = vunpack.c.l.b16 %v1110
    %v1200 = vunpack.c.h.b16 %v1110
    %v1201 = vunpack.c.l.b16 %v1111
    %v1202 = vunpack.c.h.b16 %v1111
    %v1203 = vunpack.c.l.b16 %v1112
    %v1204 = vunpack.c.h.b16 %v1112
    %v1205 = vunpack.c.l.b16 %v1113
    %v1206 = vunpack.c.h.b16 %v1113
    %v1207 = vunpack.c.l.b16 %v1114
    %v1208 = vunpack.c.h.b16 %v1114
    %v1209 = vunpack.c.l.b16 %v1115
    %v1210 = vunpack.c.h.b16 %v1115
    %v1211 = vunpack.c.l.b16 %v1116
    %v1212 = vunpack.c.h.b16 %v1116
    %v1213 = vpack.c.b16 %v1151, %v1149
    %v1214 = vpack.c.b16 %v1152, %v1150
    %v1215 = vpack.c.b16 %v1155, %v1153
    %v1216 = vpack.c.b16 %v1156, %v1154
    %v1217 = vpack.c.b16 %v1159, %v1157
    %v1218 = vpack.c.b16 %v1160, %v1158
    %v1219 = vpack.c.b16 %v1163, %v1161
    %v1220 = vpack.c.b16 %v1164, %v1162
    %v1221 = vpack.c.b16 %v1167, %v1165
    %v1222 = vpack.c.b16 %v1168, %v1166
    %v1223 = vpack.c.b16 %v1171, %v1169
    %v1224 = vpack.c.b16 %v1172, %v1170
    %v1225 = vpack.c.b16 %v1175, %v1173
    %v1226 = vpack.c.b16 %v1176, %v1174
    %v1227 = vpack.c.b16 %v1179, %v1177
    %v1228 = vpack.c.b16 %v1180, %v1178
    %v1229 = vpack.c.b16 %v1183, %v1181
    %v1230 = vpack.c.b16 %v1184, %v1182
    %v1231 = vpack.c.b16 %v1187, %v1185
    %v1232 = vpack.c.b16 %v1188, %v1186
    %v1233 = vpack.c.b16 %v1191, %v1189
    %v1234 = vpack.c.b16 %v1192, %v1190
    %v1235 = vpack.c.b16 %v1195, %v1193
    %v1236 = vpack.c.b16 %v1196, %v1194
    %v1237 = vpack.c.b16 %v1199, %v1197
    %v1238 = vpack.c.b16 %v1200, %v1198
    %v1239 = vpack.c.b16 %v1203, %v1201
    %v1240 = vpack.c.b16 %v1204, %v1202
    %v1241 = vpack.c.b16 %v1207, %v1205
    %v1242 = vpack.c.b16 %v1208, %v1206
    %v1243 = vpack.c.b16 %v1211, %v1209
    %v1244 = vpack.c.b16 %v1212, %v1210
    %1277 = vmatprep.subr.bf16.mxu0 %v1214
    %1278 = vmatpush1.bf16.msra.mxu0 %v1213
    %1279 = vmatprep.subr.bf16.mxu0 %v1216
    %1280 = vmatpush1.bf16.msra.mxu0 %v1215
    %1281 = vmatprep.subr.bf16.mxu0 %v1218
    %1282 = vmatpush1.bf16.msra.mxu0 %v1217
    %1283 = vmatprep.subr.bf16.mxu0 %v1220
    %1284 = vmatpush1.bf16.msra.mxu0 %v1219
    %1285 = vmatprep.subr.bf16.mxu0 %v1222
    %1286 = vmatpush1.bf16.msra.mxu0 %v1221
    %1287 = vmatprep.subr.bf16.mxu0 %v1224
    %1288 = vmatpush1.bf16.msra.mxu0 %v1223
    %1289 = vmatprep.subr.bf16.mxu0 %v1226
    %1290 = vmatpush1.bf16.msra.mxu0 %v1225
    %1291 = vmatprep.subr.bf16.mxu0 %v1228
    %1292 = vmatpush1.bf16.msra.mxu0 %v1227
    %1293 = vmatprep.subr.bf16.mxu0 %v1230
    %1294 = vmatpush1.bf16.msra.mxu0 %v1229
    %1295 = vmatprep.subr.bf16.mxu0 %v1232
    %1296 = vmatpush1.bf16.msra.mxu0 %v1231
    %1297 = vmatprep.subr.bf16.mxu0 %v1234
    %1298 = vmatpush1.bf16.msra.mxu0 %v1233
    %1299 = vmatprep.subr.bf16.mxu0 %v1236
    %1300 = vmatpush1.bf16.msra.mxu0 %v1235
    %1301 = vmatprep.subr.bf16.mxu0 %v1238
    %1302 = vmatpush1.bf16.msra.mxu0 %v1237
    %1303 = vmatprep.subr.bf16.mxu0 %v1240
    %1304 = vmatpush1.bf16.msra.mxu0 %v1239
    %1305 = vmatprep.subr.bf16.mxu0 %v1242
    %1306 = vmatpush1.bf16.msra.mxu0 %v1241
    %1307 = vmatprep.subr.bf16.mxu0 %v1244
    %1308 = vmatpush1.bf16.msra.mxu0 %v1243
    %1309 = vmatprep.mubr.bf16.mxu0 %v1082
    %1310 = vmatmul.mubr.bf16.gmra.mrb[0].mxu0 %v1081
    %v1311 = vpop.f32.mrb[0].mxu0
    %v1312 = vadd.f32 0.0, %v1311
    %v1313 = vpop.f32.mrb[0].mxu0
    %v1314 = vadd.f32 0.0, %v1313
    %v1315 = vpop.f32.mrb[0].mxu0
    %v1316 = vadd.f32 0.0, %v1315
    %v1317 = vpop.f32.mrb[0].mxu0
    %v1318 = vadd.f32 0.0, %v1317
    %1319 = vmatprep.mubr.bf16.mxu0 %v1084
    %1320 = vmatmul.mubr.bf16.gmra.mrb[0].mxu0 %v1083
    %v1321 = vpop.f32.mrb[0].mxu0
    %v1322 = vadd.f32 0.0, %v1321
    %v1323 = vpop.f32.mrb[0].mxu0
    %v1324 = vadd.f32 0.0, %v1323
    %v1325 = vpop.f32.mrb[0].mxu0
    %v1326 = vadd.f32 0.0, %v1325
    %v1327 = vpop.f32.mrb[0].mxu0
    %v1328 = vadd.f32 0.0, %v1327
    %1329 = vdwg.mxu0
    %v1330 = vld [vmem:[%s5] sm:$0xf]
    %v1331 = vld [vmem:[%s5 + $0x4] sm:$0xf]
    %v1332 = vld [vmem:[%s5 + $0x8] sm:$0xf]
    %v1333 = vld [vmem:[%s5 + $0xc] sm:$0xf]
    %v1334 = vld [vmem:[%s5 + $0x10] sm:$0xf]
    %v1335 = vld [vmem:[%s5 + $0x14] sm:$0xf]
    %v1336 = vld [vmem:[%s5 + $0x18] sm:$0xf]
    %v1337 = vld [vmem:[%s5 + $0x1c] sm:$0xf]
    %v1338 = vld [vmem:[%s5 + $0x20] sm:$0xf]
    %v1339 = vld [vmem:[%s5 + $0x24] sm:$0xf]
    %v1340 = vld [vmem:[%s5 + $0x28] sm:$0xf]
    %v1341 = vld [vmem:[%s5 + $0x2c] sm:$0xf]
    %v1342 = vld [vmem:[%s5 + $0x30] sm:$0xf]
    %v1343 = vld [vmem:[%s5 + $0x34] sm:$0xf]
    %v1344 = vld [vmem:[%s5 + $0x38] sm:$0xf]
    %v1345 = vld [vmem:[%s5 + $0x3c] sm:$0xf]
    %v1346 = vpack.c.bf16 %v1316, %v1312
    %v1347 = vpack.c.bf16 %v1318, %v1314
    %v1348 = vpack.c.bf16 %v1326, %v1322
    %v1349 = vpack.c.bf16 %v1328, %v1324
    %v1366 = vunpack.c.l.b16 %v1330
    %v1367 = vunpack.c.l.b16 %v1331
    %v1368 = vunpack.c.l.b16 %v1332
    %v1369 = vunpack.c.l.b16 %v1333
    %v1370 = vunpack.c.l.b16 %v1334
    %v1371 = vunpack.c.l.b16 %v1335
    %v1372 = vunpack.c.l.b16 %v1336
    %v1373 = vunpack.c.l.b16 %v1337
    %v1374 = vunpack.c.l.b16 %v1338
    %v1375 = vunpack.c.l.b16 %v1339
    %v1376 = vunpack.c.l.b16 %v1340
    %v1377 = vunpack.c.l.b16 %v1341
    %v1378 = vunpack.c.l.b16 %v1342
    %v1379 = vunpack.c.l.b16 %v1343
    %v1380 = vunpack.c.l.b16 %v1344
    %v1381 = vunpack.c.l.b16 %v1345
    %v1382 = vpack.c.b16 %v1367, %v1366
    %v1383 = vpack.c.b16 %v1369, %v1368
    %v1384 = vpack.c.b16 %v1371, %v1370
    %v1385 = vpack.c.b16 %v1373, %v1372
    %v1386 = vpack.c.b16 %v1375, %v1374
    %v1387 = vpack.c.b16 %v1377, %v1376
    %v1388 = vpack.c.b16 %v1379, %v1378
    %v1389 = vpack.c.b16 %v1381, %v1380
    %vm1390 = vcmask 261120
    %v1392 = vsel %vm1390, %v1382, 0
    %v1395 = vsel %vm1390, %v1383, 0
    %v1398 = vsel %vm1390, %v1384, 0
    %v1401 = vsel %vm1390, %v1385, 0
    %v1404 = vsel %vm1390, %v1386, 0
    %v1407 = vsel %vm1390, %v1387, 0
    %v1410 = vsel %vm1390, %v1388, 0
    %v1413 = vsel %vm1390, %v1389, 0
    %1415 = vmatprep.subr.bf16.mxu0 %v1347
    %1416 = vmatpush1.bf16.msra.mxu0 %v1346
    %1417 = vmatprep.subr.bf16.mxu0 %v1349
    %1418 = vmatpush1.bf16.msra.mxu0 %v1348
    %1419 = vmatprep.subr.bf16.mxu0 0
    %1420 = vmatpush1.bf16.msra.mxu0 0
    %1421 = vmatprep.subr.bf16.mxu0 0
    %1422 = vmatpush1.bf16.msra.mxu0 0
    %1423 = vmatprep.subr.bf16.mxu0 0
    %1424 = vmatpush1.bf16.msra.mxu0 0
    %1425 = vmatprep.subr.bf16.mxu0 0
    %1426 = vmatpush1.bf16.msra.mxu0 0
    %1427 = vmatprep.subr.bf16.mxu0 0
    %1428 = vmatpush1.bf16.msra.mxu0 0
    %1429 = vmatprep.subr.bf16.mxu0 0
    %1430 = vmatpush1.bf16.msra.mxu0 0
    %1431 = vmatprep.subr.bf16.mxu0 0
    %1432 = vmatpush1.bf16.msra.mxu0 0
    %1433 = vmatprep.subr.bf16.mxu0 0
    %1434 = vmatpush1.bf16.msra.mxu0 0
    %1435 = vmatprep.subr.bf16.mxu0 0
    %1436 = vmatpush1.bf16.msra.mxu0 0
    %1437 = vmatprep.subr.bf16.mxu0 0
    %1438 = vmatpush1.bf16.msra.mxu0 0
    %1439 = vmatprep.subr.bf16.mxu0 0
    %1440 = vmatpush1.bf16.msra.mxu0 0
    %1441 = vmatprep.subr.bf16.mxu0 0
    %1442 = vmatpush1.bf16.msra.mxu0 0
    %1443 = vmatprep.subr.bf16.mxu0 0
    %1444 = vmatpush1.bf16.msra.mxu0 0
    %1445 = vmatprep.subr.bf16.mxu0 0
    %1446 = vmatpush1.bf16.msra.mxu0 0
    %1447 = vmatprep.mubr.bf16.mxu0 0
    %1448 = vmatmul.mubr.bf16.gmra.mrb[0].mxu0 %v1392
    %v1449 = vpop.f32.mrb[0].mxu0
    %v1450 = vadd.f32 %v91, %v1449
    %v1451 = vpop.f32.mrb[0].mxu0
    %v1452 = vadd.f32 %v92, %v1451
    %v1453 = vpop.f32.mrb[0].mxu0
    %v1454 = vadd.f32 %v93, %v1453
    %v1455 = vpop.f32.mrb[0].mxu0
    %v1456 = vadd.f32 %v94, %v1455
    %1457 = vmatprep.mubr.bf16.mxu0 0
    %1458 = vmatmul.mubr.bf16.gmra.mrb[0].mxu0 %v1395
    %v1459 = vpop.f32.mrb[0].mxu0
    %v1460 = vadd.f32 %v95, %v1459
    %v1461 = vpop.f32.mrb[0].mxu0
    %v1462 = vadd.f32 %v96, %v1461
    %v1463 = vpop.f32.mrb[0].mxu0
    %v1464 = vadd.f32 %v97, %v1463
    %v1465 = vpop.f32.mrb[0].mxu0
    %v1466 = vadd.f32 %v98, %v1465
    %1467 = vmatprep.mubr.bf16.mxu0 0
    %1468 = vmatmul.mubr.bf16.gmra.mrb[0].mxu0 %v1398
    %v1469 = vpop.f32.mrb[0].mxu0
    %v1470 = vadd.f32 %v99, %v1469
    %v1471 = vpop.f32.mrb[0].mxu0
    %v1472 = vadd.f32 %v100, %v1471
    %v1473 = vpop.f32.mrb[0].mxu0
    %v1474 = vadd.f32 %v101, %v1473
    %v1475 = vpop.f32.mrb[0].mxu0
    %v1476 = vadd.f32 %v102, %v1475
    %1477 = vmatprep.mubr.bf16.mxu0 0
    %1478 = vmatmul.mubr.bf16.gmra.mrb[0].mxu0 %v1401
    %v1479 = vpop.f32.mrb[0].mxu0
    %v1480 = vadd.f32 %v103, %v1479
    %v1481 = vpop.f32.mrb[0].mxu0
    %v1482 = vadd.f32 %v104, %v1481
    %v1483 = vpop.f32.mrb[0].mxu0
    %v1484 = vadd.f32 %v105, %v1483
    %v1485 = vpop.f32.mrb[0].mxu0
    %v1486 = vadd.f32 %v106, %v1485
    %1487 = vmatprep.mubr.bf16.mxu0 0
    %1488 = vmatmul.mubr.bf16.gmra.mrb[0].mxu0 %v1404
    %v1489 = vpop.f32.mrb[0].mxu0
    %v1490 = vadd.f32 %v107, %v1489
    %v1491 = vpop.f32.mrb[0].mxu0
    %v1492 = vadd.f32 %v108, %v1491
    %v1493 = vpop.f32.mrb[0].mxu0
    %v1494 = vadd.f32 %v109, %v1493
    %v1495 = vpop.f32.mrb[0].mxu0
    %v1496 = vadd.f32 %v110, %v1495
    %1497 = vmatprep.mubr.bf16.mxu0 0
    %1498 = vmatmul.mubr.bf16.gmra.mrb[0].mxu0 %v1407
    %v1499 = vpop.f32.mrb[0].mxu0
    %v1500 = vadd.f32 %v111, %v1499
    %v1501 = vpop.f32.mrb[0].mxu0
    %v1502 = vadd.f32 %v112, %v1501
    %v1503 = vpop.f32.mrb[0].mxu0
    %v1504 = vadd.f32 %v113, %v1503
    %v1505 = vpop.f32.mrb[0].mxu0
    %v1506 = vadd.f32 %v114, %v1505
    %1507 = vmatprep.mubr.bf16.mxu0 0
    %1508 = vmatmul.mubr.bf16.gmra.mrb[0].mxu0 %v1410
    %v1509 = vpop.f32.mrb[0].mxu0
    %v1510 = vadd.f32 %v115, %v1509
    %v1511 = vpop.f32.mrb[0].mxu0
    %v1512 = vadd.f32 %v116, %v1511
    %v1513 = vpop.f32.mrb[0].mxu0
    %v1514 = vadd.f32 %v117, %v1513
    %v1515 = vpop.f32.mrb[0].mxu0
    %v1516 = vadd.f32 %v118, %v1515
    %1517 = vmatprep.mubr.bf16.mxu0 0
    %1518 = vmatmul.mubr.bf16.gmra.mrb[0].mxu0 %v1413
    %v1519 = vpop.f32.mrb[0].mxu0
    %v1520 = vadd.f32 %v119, %v1519
    %v1521 = vpop.f32.mrb[0].mxu0
    %v1522 = vadd.f32 %v120, %v1521
    %v1523 = vpop.f32.mrb[0].mxu0
    %v1524 = vadd.f32 %v121, %v1523
    %v1525 = vpop.f32.mrb[0].mxu0
    %v1526 = vadd.f32 %v122, %v1525
    %1527 = vdwg.mxu0
    %v1528 = vmax.f32 %v1450, 0.0
    %v1529 = vmax.f32 %v1452, 0.0
    %v1530 = vmax.f32 %v1454, 0.0
    %v1531 = vmax.f32 %v1456, 0.0
    %v1532 = vmax.f32 %v1460, 0.0
    %v1533 = vmax.f32 %v1462, 0.0
    %v1534 = vmax.f32 %v1464, 0.0
    %v1535 = vmax.f32 %v1466, 0.0
    %v1536 = vmax.f32 %v1470, 0.0
    %v1537 = vmax.f32 %v1472, 0.0
    %v1538 = vmax.f32 %v1474, 0.0
    %v1539 = vmax.f32 %v1476, 0.0
    %v1540 = vmax.f32 %v1480, 0.0
    %v1541 = vmax.f32 %v1482, 0.0
    %v1542 = vmax.f32 %v1484, 0.0
    %v1543 = vmax.f32 %v1486, 0.0
    %v1544 = vmax.f32 %v1490, 0.0
    %v1545 = vmax.f32 %v1492, 0.0
    %v1546 = vmax.f32 %v1494, 0.0
    %v1547 = vmax.f32 %v1496, 0.0
    %v1548 = vmax.f32 %v1500, 0.0
    %v1549 = vmax.f32 %v1502, 0.0
    %v1550 = vmax.f32 %v1504, 0.0
    %v1551 = vmax.f32 %v1506, 0.0
    %v1552 = vmax.f32 %v1510, 0.0
    %v1553 = vmax.f32 %v1512, 0.0
    %v1554 = vmax.f32 %v1514, 0.0
    %v1555 = vmax.f32 %v1516, 0.0
    %v1556 = vmax.f32 %v1520, 0.0
    %v1557 = vmax.f32 %v1522, 0.0
    %v1558 = vmax.f32 %v1524, 0.0
    %v1559 = vmax.f32 %v1526, 0.0
    %v1560 = vmul.f32 %v1528, %v123
    %v1561 = vmul.f32 %v1529, %v124
    %v1562 = vmul.f32 %v1530, %v125
    %v1563 = vmul.f32 %v1531, %v126
    %v1564 = vmul.f32 %v1532, %v127
    %v1565 = vmul.f32 %v1533, %v128
    %v1566 = vmul.f32 %v1534, %v129
    %v1567 = vmul.f32 %v1535, %v130
    %v1568 = vmul.f32 %v1536, %v131
    %v1569 = vmul.f32 %v1537, %v132
    %v1570 = vmul.f32 %v1538, %v133
    %v1571 = vmul.f32 %v1539, %v134
    %v1572 = vmul.f32 %v1540, %v135
    %v1573 = vmul.f32 %v1541, %v136
    %v1574 = vmul.f32 %v1542, %v137
    %v1575 = vmul.f32 %v1543, %v138
    %v1576 = vmul.f32 %v1544, %v139
    %v1577 = vmul.f32 %v1545, %v140
    %v1578 = vmul.f32 %v1546, %v141
    %v1579 = vmul.f32 %v1547, %v142
    %v1580 = vmul.f32 %v1548, %v143
    %v1581 = vmul.f32 %v1549, %v144
    %v1582 = vmul.f32 %v1550, %v145
    %v1583 = vmul.f32 %v1551, %v146
    %v1584 = vmul.f32 %v1552, %v147
    %v1585 = vmul.f32 %v1553, %v148
    %v1586 = vmul.f32 %v1554, %v149
    %v1587 = vmul.f32 %v1555, %v150
    %v1588 = vmul.f32 %v1556, %v151
    %v1589 = vmul.f32 %v1557, %v152
    %v1590 = vmul.f32 %v1558, %v153
    %v1591 = vmul.f32 %v1559, %v154
    %v1592 = vadd.f32 %v1560, %v1562
    %v1593 = vadd.f32 %v1592, %v1564
    %v1594 = vadd.f32 %v1593, %v1566
    %v1595 = vadd.f32 %v1594, %v1568
    %v1596 = vadd.f32 %v1595, %v1570
    %v1597 = vadd.f32 %v1596, %v1572
    %v1598 = vadd.f32 %v1597, %v1574
    %v1599 = vadd.f32 %v1598, %v1576
    %v1600 = vadd.f32 %v1599, %v1578
    %v1601 = vadd.f32 %v1600, %v1580
    %v1602 = vadd.f32 %v1601, %v1582
    %v1603 = vadd.f32 %v1602, %v1584
    %v1604 = vadd.f32 %v1603, %v1586
    %v1605 = vadd.f32 %v1604, %v1588
    %v1606 = vadd.f32 %v1605, %v1590
    %v1607 = vrot.slane %v1606, 4
    %v1608 = vadd.f32 %v1606, %v1607
    %v1609 = vrot.slane %v1608, 2
    %v1610 = vadd.f32 %v1608, %v1609
    %v1611 = vrot.slane %v1610, 1
    %v1612 = vadd.f32 %v1610, %v1611
    %v1613 = vadd.f32 %v1561, %v1563
    %v1614 = vadd.f32 %v1613, %v1565
    %v1615 = vadd.f32 %v1614, %v1567
    %v1616 = vadd.f32 %v1615, %v1569
    %v1617 = vadd.f32 %v1616, %v1571
    %v1618 = vadd.f32 %v1617, %v1573
    %v1619 = vadd.f32 %v1618, %v1575
    %v1620 = vadd.f32 %v1619, %v1577
    %v1621 = vadd.f32 %v1620, %v1579
    %v1622 = vadd.f32 %v1621, %v1581
    %v1623 = vadd.f32 %v1622, %v1583
    %v1624 = vadd.f32 %v1623, %v1585
    %v1625 = vadd.f32 %v1624, %v1587
    %v1626 = vadd.f32 %v1625, %v1589
    %v1627 = vadd.f32 %v1626, %v1591
    %v1628 = vrot.slane %v1627, 4
    %v1629 = vadd.f32 %v1627, %v1628
    %v1630 = vrot.slane %v1629, 2
    %v1631 = vadd.f32 %v1629, %v1630
    %v1632 = vrot.slane %v1631, 1
    %v1633 = vadd.f32 %v1631, %v1632
    %v1635 = vlaneseq
    %v1636 = vshrl.u32 %v1635, 7
    %v1637 = vsub.s32 0, %v1636
    %v1638 = vrot.slane %v160, %v1637
    %v1639 = vlaneseq
    %v1640 = vshrl.u32 %v1639, 7
    %v1641 = vsub.s32 1, %v1640
    %v1642 = vrot.slane %v160, %v1641
    %v1645 = vadd.f32 %v1612, %v1638
    %v1646 = vadd.f32 %v1633, %v1642
    %v1649 = vcombine.low %v1645, %v1646
    %v1651 = vunpack.c.l.s4 1966171168
    %v1652 = vunpack.c.0.s8 %v1651
    %v1653 = vlaneseq
    %v1654 = vshrl.u32 %v1653, 7
    %v1655 = vsub.s32 %v1652, %v1654
    %v1656 = vrot.slane %v1649, %v1655
    %v1658 = vunpack.c.l.s4 1966171168
    %v1659 = vunpack.c.0.s8 %v1658
    %v1660 = vlaneseq
    %v1661 = vshrl.u32 %v1660, 7
    %v1662 = vsub.s32 %v1659, %v1661
    %v1663 = vrot.slane %v1656, %v1662
    %v1665 = vlaneseq
    %vm1666 = vcmp.ge.s32.totalorder %v1665, 0
    %vm1667 = vcmp.lt.s32.totalorder %v1665, 256
    %vm1668 = vmand %vm1666, %vm1667
    %1669 = vst.msk [vmem:[#allocation9] sm:$0x3] %vm1668, %v1663
    // Predicated region
    $region38: #{tpu_custom_call.1} parent=1 // pred_check
      _
    $region39: #{tpu_custom_call.1} parent=1 // pred_check_branch
      %1671 = sbr.rel (0) target = $region41
    $region40: #{tpu_custom_call.1} parent=1 // pred_region
      %s1673 = ssub.s32 32, 32
      %1674 = vsyncadd [#allocation5], %s1673
      %s1676 = sshll.u32 [#allocation9], 4
      %s1677 = int_to_ptr.vmem [resolvable:$true] %s1676
      %1679 = dma.vmem_to_hbm [thread:$0]  %s1677, 32, %s6, [#allocation5]
    $region41: #{tpu_custom_call.1} parent=1 // pred_fallthru
      _
    // Predicated region
    $region42: #{tpu_custom_call.1} parent=1 // pred_check
      _
    $region43: #{tpu_custom_call.1} parent=1 // pred_check_branch
      %1681 = sbr.rel (0) target = $region45
    $region44: #{tpu_custom_call.1} parent=1 // pred_region
      %1682 = dma.done [#allocation5], 32
    $region45: #{tpu_custom_call.1} parent=1 // pred_fallthru
      _
    %1683 = vsyncpa [#allocation4], 1
    %1684 = vsyncpa [#allocation7], 1
    %1685 = vsyncpa [#allocation5], 1

</llo_original>
